<compile_context>
chip_gen: v6e
topology: v6e:2x2x1
jax: 0.10.0
libtpu: 0.0.40
codegen_flags: <defaults>
</compile_context>

<pallas_src>
import functools

import jax
import jax.numpy as jnp
from jax.experimental import pallas as pl
from jax.experimental.pallas import tpu as pltpu

# ---- hyperparameters implied by the module's __init__ (small, synthetic) ----
n_embed   = 32
num_heads = 4
d_k       = n_embed // num_heads      # head_size = 8
vec_size  = n_embed
d_model   = num_heads * d_k           # 32
dropout_p = 0.1                       # eval mode -> identity
B, T      = 2, 8
EPS       = 1e-5                      # nn.LayerNorm default

# Row layout of the packed small-vector slab (a single (8, 128) f32 tile).
_ROW_LN1_G, _ROW_LN1_B, _ROW_BP, _ROW_LN2_G, _ROW_LN2_B, _ROW_B2, _ROW_B1 = range(7)
_VEC_ROWS, _VEC_COLS = 8, 128


def _layernorm(v, g, b):
    mu  = jnp.mean(v, axis=-1, keepdims=True)
    var = jnp.mean((v - mu) ** 2, axis=-1, keepdims=True)
    return (v - mu) * jax.lax.rsqrt(var + EPS) * g + b


def block_kernel(x_ref, vec_ref, wqkv_ref, wp_ref, w1_ref, w2_ref, o_ref,
                 *, batch, seq):
    # Single invocation: whole (B*T, C) slab + all parameters VMEM-resident.
    x = x_ref[...].astype(jnp.float32)                       # (B*T, C)

    # Unpack the small-vector slab (static row/col slices of a VMEM ref).
    ln1_g = vec_ref[_ROW_LN1_G:_ROW_LN1_G + 1, :n_embed]     # (1, C)
    ln1_b = vec_ref[_ROW_LN1_B:_ROW_LN1_B + 1, :n_embed]
    bp    = vec_ref[_ROW_BP:_ROW_BP + 1,       :n_embed]
    ln2_g = vec_ref[_ROW_LN2_G:_ROW_LN2_G + 1, :n_embed]
    ln2_b = vec_ref[_ROW_LN2_B:_ROW_LN2_B + 1, :n_embed]
    b2    = vec_ref[_ROW_B2:_ROW_B2 + 1,       :n_embed]
    b1    = vec_ref[_ROW_B1:_ROW_B1 + 1,       :4 * n_embed] # (1, 4C)

    # ---------------- self-attention branch ----------------
    h1 = _layernorm(x, ln1_g, ln1_b)                          # (B*T, C)

    # Fused QKV projection: one wide MXU push (N=3C) instead of three narrow ones.
    # The d_k**-0.5 attention scale is already folded into the q columns.
    qkv = jnp.dot(h1, wqkv_ref[...], preferred_element_type=jnp.float32)  # (B*T, 3C)
    q = qkv[:, 0:n_embed]
    k = qkv[:, n_embed:2 * n_embed]
    v = qkv[:, 2 * n_embed:3 * n_embed]

    # Heads fused into a single leading batch dim g = B*H for the batched matmuls.
    def to_heads(a):
        a = a.reshape(batch, seq, num_heads, d_k)
        a = jnp.transpose(a, (0, 2, 1, 3))                    # (B, H, T, d_k)
        return a.reshape(batch * num_heads, seq, d_k)

    qh, kh, vh = to_heads(q), to_heads(k), to_heads(v)

    s = jnp.einsum('gtd,gsd->gts', qh, kh,
                   preferred_element_type=jnp.float32)        # (B*H, T, T)
    s = s - jnp.max(s, axis=-1, keepdims=True)
    p = jnp.exp(s)
    # Exact reciprocal keeps 1e-4 agreement with the reference.
    p = p * pl.reciprocal(jnp.sum(p, axis=-1, keepdims=True))
    att = jnp.einsum('gts,gsd->gtd', p, vh,
                     preferred_element_type=jnp.float32)      # (B*H, T, d_k)
    att = att.reshape(batch, num_heads, seq, d_k)
    att = jnp.transpose(att, (0, 2, 1, 3)).reshape(batch * seq, num_heads * d_k)

    proj = jnp.dot(att, wp_ref[...], preferred_element_type=jnp.float32) + bp
    x = x + proj                                              # residual 1

    # ---------------- MLP branch ----------------
    h2 = _layernorm(x, ln2_g, ln2_b)
    f = jnp.dot(h2, w1_ref[...], preferred_element_type=jnp.float32) + b1
    f = jnp.maximum(f, 0.0)
    f = jnp.dot(f, w2_ref[...], preferred_element_type=jnp.float32) + b2
    x = x + f                                                 # residual 2

    # Single full-block store.
    o_ref[...] = x.astype(o_ref.dtype)


def pack_params(params):
    """One-time parameter transform: fuse QKV, fold scale, pack tiny vectors."""
    (ln1_g, ln1_b, wq, wk, wv, wp, bp, ln2_g, ln2_b, w1, b1, w2, b2) = params
    scale = d_k ** -0.5
    wqkv = jnp.concatenate([wq * scale, wk, wv], axis=1)      # (C, 3C), scale folded

    vec = jnp.zeros((_VEC_ROWS, _VEC_COLS), jnp.float32)
    vec = vec.at[_ROW_LN1_G, :n_embed].set(ln1_g[0])
    vec = vec.at[_ROW_LN1_B, :n_embed].set(ln1_b[0])
    vec = vec.at[_ROW_BP,    :n_embed].set(bp[0])
    vec = vec.at[_ROW_LN2_G, :n_embed].set(ln2_g[0])
    vec = vec.at[_ROW_LN2_B, :n_embed].set(ln2_b[0])
    vec = vec.at[_ROW_B2,    :n_embed].set(b2[0])
    vec = vec.at[_ROW_B1,    :4 * n_embed].set(b1[0])
    return vec, wqkv, wp, w1, w2


def block_forward(x, params):
    Bx, Tx, Cx = x.shape
    x2 = x.reshape(Bx * Tx, Cx)                               # flat 2-D activation slab
    vec, wqkv, wp, w1, w2 = pack_params(params)

    vmem_spec = pl.BlockSpec(memory_space=pltpu.MemorySpace.VMEM)
    kernel = functools.partial(block_kernel, batch=Bx, seq=Tx)

    out2 = pl.pallas_call(
        kernel,
        out_shape=jax.ShapeDtypeStruct((Bx * Tx, Cx), x.dtype),
        in_specs=[vmem_spec] * 6,        # x2, vec slab, wqkv, wp, w1, w2
        out_specs=vmem_spec,
    )(x2, vec, wqkv, wp, w1, w2)
    return out2.reshape(Bx, Tx, Cx)


def init_params(key):
    ks = jax.random.split(key, 8)
    std = 0.02
    # torch Linear stores (out, in); pre-transposed to (in, out) so kernel does x @ W.
    wq = jax.random.normal(ks[0], (vec_size, num_heads * d_k), jnp.float32) * std
    wk = jax.random.normal(ks[1], (vec_size, num_heads * d_k), jnp.float32) * std
    wv = jax.random.normal(ks[2], (vec_size, num_heads * d_k), jnp.float32) * std
    wp = jax.random.normal(ks[3], (d_model, n_embed), jnp.float32) * std
    bp = jnp.zeros((1, n_embed), jnp.float32)
    w1 = jax.random.normal(ks[4], (n_embed, 4 * n_embed), jnp.float32) * std
    b1 = jnp.zeros((1, 4 * n_embed), jnp.float32)
    w2 = jax.random.normal(ks[5], (4 * n_embed, n_embed), jnp.float32) * std
    b2 = jnp.zeros((1, n_embed), jnp.float32)
    ln1_g = jnp.ones((1, n_embed), jnp.float32)
    ln1_b = jnp.zeros((1, n_embed), jnp.float32)
    ln2_g = jnp.ones((1, n_embed), jnp.float32)
    ln2_b = jnp.zeros((1, n_embed), jnp.float32)
    return [ln1_g, ln1_b, wq, wk, wv, wp, bp, ln2_g, ln2_b, w1, b1, w2, b2]


def block_reference(x, params):
    # Pure-JAX reference mirroring the PyTorch forward (eval mode, non-causal).
    (ln1_g, ln1_b, wq, wk, wv, wp, bp, ln2_g, ln2_b, w1, b1, w2, b2) = params

    def ln(v, g, b):
        mu = jnp.mean(v, -1, keepdims=True)
        var = jnp.mean((v - mu) ** 2, -1, keepdims=True)
        return (v - mu) / jnp.sqrt(var + EPS) * g + b

    h1 = ln(x, ln1_g[0], ln1_b[0])
    q = h1 @ wq; k = h1 @ wk; v = h1 @ wv
    outs = []
    for h in range(num_heads):
        lo, hi = h * d_k, (h + 1) * d_k
        s = (q[..., lo:hi] @ jnp.swapaxes(k[..., lo:hi], -1, -2)) * (d_k ** -0.5)
        p = jax.nn.softmax(s, axis=-1)
        outs.append(p @ v[..., lo:hi])
    att = jnp.concatenate(outs, -1)
    x = x + (att @ wp + bp[0])
    h2 = ln(x, ln2_g[0], ln2_b[0])
    f = jnp.maximum(h2 @ w1 + b1[0], 0.0) @ w2 + b2[0]
    return x + f


if __name__ == "__main__":
    key = jax.random.PRNGKey(0)
    kx, kp = jax.random.split(key)
    x = jax.random.normal(kx, (B, T, n_embed), jnp.float32)
    params = init_params(kp)

    out = block_forward(x, params)
    out = jax.block_until_ready(out)

    ref = block_reference(x, params)
    assert out.shape == (B, T, n_embed)
    assert jnp.allclose(out, ref, atol=1e-4, rtol=1e-4)

    print("KERNEL_OK")
</pallas_src>

<mosaic_0001>
module attributes {stable_mosaic.version = 11 : i64} {
  func.func @block_kernel(%arg0: memref<16x32xf32, #tpu.memory_space<vmem>>, %arg1: memref<8x128xf32, #tpu.memory_space<vmem>>, %arg2: memref<32x96xf32, #tpu.memory_space<vmem>>, %arg3: memref<32x32xf32, #tpu.memory_space<vmem>>, %arg4: memref<32x128xf32, #tpu.memory_space<vmem>>, %arg5: memref<128x32xf32, #tpu.memory_space<vmem>>, %arg6: memref<16x32xf32, #tpu.memory_space<vmem>>) attributes {dimension_semantics = [], scalar_prefetch = 0 : i64, scratch_operands = 0 : i64, tpu.core_type = #tpu.core_type<tc>} {
    %c0 = arith.constant 0 : index
    %c0_0 = arith.constant 0 : index
    %0 = vector.load %arg0[%c0, %c0_0] : memref<16x32xf32, #tpu.memory_space<vmem>>, vector<16x32xf32>
    %c0_1 = arith.constant 0 : index
    %c0_2 = arith.constant 0 : index
    %1 = vector.load %arg1[%c0_1, %c0_2] : memref<8x128xf32, #tpu.memory_space<vmem>>, vector<1x32xf32>
    %c1 = arith.constant 1 : index
    %c0_3 = arith.constant 0 : index
    %2 = vector.load %arg1[%c1, %c0_3] : memref<8x128xf32, #tpu.memory_space<vmem>>, vector<1x32xf32>
    %c2 = arith.constant 2 : index
    %c0_4 = arith.constant 0 : index
    %3 = vector.load %arg1[%c2, %c0_4] : memref<8x128xf32, #tpu.memory_space<vmem>>, vector<1x32xf32>
    %c3 = arith.constant 3 : index
    %c0_5 = arith.constant 0 : index
    %4 = vector.load %arg1[%c3, %c0_5] : memref<8x128xf32, #tpu.memory_space<vmem>>, vector<1x32xf32>
    %c4 = arith.constant 4 : index
    %c0_6 = arith.constant 0 : index
    %5 = vector.load %arg1[%c4, %c0_6] : memref<8x128xf32, #tpu.memory_space<vmem>>, vector<1x32xf32>
    %c5 = arith.constant 5 : index
    %c0_7 = arith.constant 0 : index
    %6 = vector.load %arg1[%c5, %c0_7] : memref<8x128xf32, #tpu.memory_space<vmem>>, vector<1x32xf32>
    %c6 = arith.constant 6 : index
    %c0_8 = arith.constant 0 : index
    %7 = vector.load %arg1[%c6, %c0_8] : memref<8x128xf32, #tpu.memory_space<vmem>>, vector<1x128xf32>
    %cst = arith.constant dense<0.000000e+00> : vector<16xf32>
    %8 = vector.multi_reduction <add>, %0, %cst [1] : vector<16x32xf32> to vector<16xf32>
    %9 = vector.shape_cast %8 : vector<16xf32> to vector<16x1xf32>
    %cst_9 = arith.constant 3.200000e+01 : f32
    %10 = vector.broadcast %cst_9 : f32 to vector<16x1xf32>
    %11 = arith.divf %9, %10 : vector<16x1xf32>
    %12 = vector.broadcast %11 : vector<16x1xf32> to vector<16x32xf32>
    %13 = arith.subf %0, %12 : vector<16x32xf32>
    %14 = arith.mulf %13, %13 : vector<16x32xf32>
    %cst_10 = arith.constant dense<0.000000e+00> : vector<16xf32>
    %15 = vector.multi_reduction <add>, %14, %cst_10 [1] : vector<16x32xf32> to vector<16xf32>
    %16 = vector.shape_cast %15 : vector<16xf32> to vector<16x1xf32>
    %cst_11 = arith.constant 3.200000e+01 : f32
    %17 = vector.broadcast %cst_11 : f32 to vector<16x1xf32>
    %18 = arith.divf %16, %17 : vector<16x1xf32>
    %19 = vector.broadcast %11 : vector<16x1xf32> to vector<16x32xf32>
    %20 = arith.subf %0, %19 : vector<16x32xf32>
    %cst_12 = arith.constant 9.99999974E-6 : f32
    %21 = vector.broadcast %cst_12 : f32 to vector<16x1xf32>
    %22 = arith.addf %18, %21 : vector<16x1xf32>
    %23 = math.rsqrt %22 : vector<16x1xf32>
    %24 = vector.broadcast %23 : vector<16x1xf32> to vector<16x32xf32>
    %25 = arith.mulf %20, %24 : vector<16x32xf32>
    %26 = vector.broadcast %1 : vector<1x32xf32> to vector<16x32xf32>
    %27 = arith.mulf %25, %26 : vector<16x32xf32>
    %28 = vector.broadcast %2 : vector<1x32xf32> to vector<16x32xf32>
    %29 = arith.addf %27, %28 : vector<16x32xf32>
    %c0_13 = arith.constant 0 : index
    %c0_14 = arith.constant 0 : index
    %30 = vector.load %arg2[%c0_13, %c0_14] : memref<32x96xf32, #tpu.memory_space<vmem>>, vector<32x96xf32>
    %cst_15 = arith.constant dense<0.000000e+00> : vector<16x96xf32>
    %31 = tpu.matmul %29, %30, %cst_15 {dimension_numbers = #tpu.dot_dimension_numbers<[1], [0], [0], [1], [0, 0, 1, 1], [], []>} : vector<16x32xf32>, vector<32x96xf32>, vector<16x96xf32> -> vector<16x96xf32>
    %32 = vector.extract_strided_slice %31 {offsets = [0, 0], sizes = [16, 32], strides = [1, 1]} : vector<16x96xf32> to vector<16x32xf32>
    %33 = vector.extract_strided_slice %31 {offsets = [0, 32], sizes = [16, 32], strides = [1, 1]} : vector<16x96xf32> to vector<16x32xf32>
    %34 = vector.extract_strided_slice %31 {offsets = [0, 64], sizes = [16, 32], strides = [1, 1]} : vector<16x96xf32> to vector<16x32xf32>
    %35 = vector.shape_cast %32 : vector<16x32xf32> to vector<2x8x4x8xf32>
    %36 = tpu.transpose %35, [0, 2, 1, 3] : vector<2x8x4x8xf32> -> vector<2x4x8x8xf32>
    %37 = vector.shape_cast %36 : vector<2x4x8x8xf32> to vector<8x8x8xf32>
    %38 = vector.shape_cast %33 : vector<16x32xf32> to vector<2x8x4x8xf32>
    %39 = tpu.transpose %38, [0, 2, 1, 3] : vector<2x8x4x8xf32> -> vector<2x4x8x8xf32>
    %40 = vector.shape_cast %39 : vector<2x4x8x8xf32> to vector<8x8x8xf32>
    %41 = vector.shape_cast %34 : vector<16x32xf32> to vector<2x8x4x8xf32>
    %42 = tpu.transpose %41, [0, 2, 1, 3] : vector<2x8x4x8xf32> -> vector<2x4x8x8xf32>
    %43 = vector.shape_cast %42 : vector<2x4x8x8xf32> to vector<8x8x8xf32>
    "tpu.trace_start"() <{level = 10 : i32, message = "gtd,gsd->gts"}> : () -> ()
    %cst_16 = arith.constant dense<0.000000e+00> : vector<8x8x8xf32>
    %44 = tpu.matmul %37, %40, %cst_16 {dimension_numbers = #tpu.dot_dimension_numbers<[2], [2], [1], [1], [0, 0, 0, 1, 1, 1], [0], [0]>} : vector<8x8x8xf32>, vector<8x8x8xf32>, vector<8x8x8xf32> -> vector<8x8x8xf32>
    "tpu.trace_stop"() : () -> ()
    %cst_17 = arith.constant dense<0xFF800000> : vector<8x8xf32>
    %45 = vector.multi_reduction <maximumf>, %44, %cst_17 [2] : vector<8x8x8xf32> to vector<8x8xf32>
    %46 = vector.shape_cast %45 : vector<8x8xf32> to vector<8x8x1xf32>
    %47 = vector.broadcast %46 : vector<8x8x1xf32> to vector<8x8x8xf32>
    %48 = arith.subf %44, %47 : vector<8x8x8xf32>
    %49 = math.exp %48 : vector<8x8x8xf32>
    %cst_18 = arith.constant dense<0.000000e+00> : vector<8x8xf32>
    %50 = vector.multi_reduction <add>, %49, %cst_18 [2] : vector<8x8x8xf32> to vector<8x8xf32>
    %51 = vector.shape_cast %50 : vector<8x8xf32> to vector<8x8x1xf32>
    %52 = tpu.reciprocal %51 : vector<8x8x1xf32> -> vector<8x8x1xf32>
    %53 = vector.broadcast %52 : vector<8x8x1xf32> to vector<8x8x8xf32>
    %54 = arith.mulf %49, %53 : vector<8x8x8xf32>
    "tpu.trace_start"() <{level = 10 : i32, message = "gts,gsd->gtd"}> : () -> ()
    %cst_19 = arith.constant dense<0.000000e+00> : vector<8x8x8xf32>
    %55 = tpu.matmul %54, %43, %cst_19 {dimension_numbers = #tpu.dot_dimension_numbers<[2], [1], [1], [2], [0, 0, 0, 1, 1, 2], [0], [0]>} : vector<8x8x8xf32>, vector<8x8x8xf32>, vector<8x8x8xf32> -> vector<8x8x8xf32>
    "tpu.trace_stop"() : () -> ()
    %56 = vector.shape_cast %55 : vector<8x8x8xf32> to vector<2x4x8x8xf32>
    %57 = tpu.transpose %56, [0, 2, 1, 3] : vector<2x4x8x8xf32> -> vector<2x8x4x8xf32>
    %58 = vector.shape_cast %57 : vector<2x8x4x8xf32> to vector<16x32xf32>
    %c0_20 = arith.constant 0 : index
    %c0_21 = arith.constant 0 : index
    %59 = vector.load %arg3[%c0_20, %c0_21] : memref<32x32xf32, #tpu.memory_space<vmem>>, vector<32x32xf32>
    %cst_22 = arith.constant dense<0.000000e+00> : vector<16x32xf32>
    %60 = tpu.matmul %58, %59, %cst_22 {dimension_numbers = #tpu.dot_dimension_numbers<[1], [0], [0], [1], [0, 0, 1, 1], [], []>} : vector<16x32xf32>, vector<32x32xf32>, vector<16x32xf32> -> vector<16x32xf32>
    %61 = vector.broadcast %3 : vector<1x32xf32> to vector<16x32xf32>
    %62 = arith.addf %60, %61 : vector<16x32xf32>
    %63 = arith.addf %0, %62 : vector<16x32xf32>
    %cst_23 = arith.constant dense<0.000000e+00> : vector<16xf32>
    %64 = vector.multi_reduction <add>, %63, %cst_23 [1] : vector<16x32xf32> to vector<16xf32>
    %65 = vector.shape_cast %64 : vector<16xf32> to vector<16x1xf32>
    %cst_24 = arith.constant 3.200000e+01 : f32
    %66 = vector.broadcast %cst_24 : f32 to vector<16x1xf32>
    %67 = arith.divf %65, %66 : vector<16x1xf32>
    %68 = vector.broadcast %67 : vector<16x1xf32> to vector<16x32xf32>
    %69 = arith.subf %63, %68 : vector<16x32xf32>
    %70 = arith.mulf %69, %69 : vector<16x32xf32>
    %cst_25 = arith.constant dense<0.000000e+00> : vector<16xf32>
    %71 = vector.multi_reduction <add>, %70, %cst_25 [1] : vector<16x32xf32> to vector<16xf32>
    %72 = vector.shape_cast %71 : vector<16xf32> to vector<16x1xf32>
    %cst_26 = arith.constant 3.200000e+01 : f32
    %73 = vector.broadcast %cst_26 : f32 to vector<16x1xf32>
    %74 = arith.divf %72, %73 : vector<16x1xf32>
    %75 = vector.broadcast %67 : vector<16x1xf32> to vector<16x32xf32>
    %76 = arith.subf %63, %75 : vector<16x32xf32>
    %cst_27 = arith.constant 9.99999974E-6 : f32
    %77 = vector.broadcast %cst_27 : f32 to vector<16x1xf32>
    %78 = arith.addf %74, %77 : vector<16x1xf32>
    %79 = math.rsqrt %78 : vector<16x1xf32>
    %80 = vector.broadcast %79 : vector<16x1xf32> to vector<16x32xf32>
    %81 = arith.mulf %76, %80 : vector<16x32xf32>
    %82 = vector.broadcast %4 : vector<1x32xf32> to vector<16x32xf32>
    %83 = arith.mulf %81, %82 : vector<16x32xf32>
    %84 = vector.broadcast %5 : vector<1x32xf32> to vector<16x32xf32>
    %85 = arith.addf %83, %84 : vector<16x32xf32>
    %c0_28 = arith.constant 0 : index
    %c0_29 = arith.constant 0 : index
    %86 = vector.load %arg4[%c0_28, %c0_29] : memref<32x128xf32, #tpu.memory_space<vmem>>, vector<32x128xf32>
    %cst_30 = arith.constant dense<0.000000e+00> : vector<16x128xf32>
    %87 = tpu.matmul %85, %86, %cst_30 {dimension_numbers = #tpu.dot_dimension_numbers<[1], [0], [0], [1], [0, 0, 1, 1], [], []>} : vector<16x32xf32>, vector<32x128xf32>, vector<16x128xf32> -> vector<16x128xf32>
    %88 = vector.broadcast %7 : vector<1x128xf32> to vector<16x128xf32>
    %89 = arith.addf %87, %88 : vector<16x128xf32>
    %cst_31 = arith.constant 0.000000e+00 : f32
    %90 = vector.broadcast %cst_31 : f32 to vector<16x128xf32>
    %91 = arith.maximumf %89, %90 : vector<16x128xf32>
    %c0_32 = arith.constant 0 : index
    %c0_33 = arith.constant 0 : index
    %92 = vector.load %arg5[%c0_32, %c0_33] : memref<128x32xf32, #tpu.memory_space<vmem>>, vector<128x32xf32>
    %cst_34 = arith.constant dense<0.000000e+00> : vector<16x32xf32>
    %93 = tpu.matmul %91, %92, %cst_34 {dimension_numbers = #tpu.dot_dimension_numbers<[1], [0], [0], [1], [0, 0, 1, 1], [], []>} : vector<16x128xf32>, vector<128x32xf32>, vector<16x32xf32> -> vector<16x32xf32>
    %94 = vector.broadcast %6 : vector<1x32xf32> to vector<16x32xf32>
    %95 = arith.addf %93, %94 : vector<16x32xf32>
    %96 = arith.addf %63, %95 : vector<16x32xf32>
    %c0_35 = arith.constant 0 : index
    %c0_36 = arith.constant 0 : index
    %97 = vector.load %arg6[%c0_35, %c0_36] : memref<16x32xf32, #tpu.memory_space<vmem>>, vector<16x32xf32>
    tpu.vector_store %arg6[%c0_35, %c0_36], %96 {strides = array<i32>} : memref<16x32xf32, #tpu.memory_space<vmem>>, vector<16x32xf32>,
    return
  }
}

</mosaic_0001>

<llo_original>
// kernel: tpu_custom_call.1
$region0: #{tpu_custom_call.1}
  #allocation0 [shape = 'u32[]', space=smem, size = 0x4, offset = 0x4, fixed_abs, tag = 'smem constant byte address 0x4 - core index']
  #allocation1 [shape = 'u32[144,128]{1,0:T(1,128)}', space=vmem, size = 0x12000, scoped, tag = 'internal scratch']
  %s0 = inlined_call_operand.vmem [shape: f32[16,32], index: 0, kind: input, shape index: {}]
  %s1 = inlined_call_operand.vmem [shape: f32[8,128], index: 1, kind: input, shape index: {}]
  %s2 = inlined_call_operand.vmem [shape: f32[32,96], index: 2, kind: input, shape index: {}]
  %s3 = inlined_call_operand.vmem [shape: f32[32,32], index: 3, kind: input, shape index: {}]
  %s4 = inlined_call_operand.vmem [shape: f32[32,128], index: 4, kind: input, shape index: {}]
  %s5 = inlined_call_operand.vmem [shape: f32[128,32], index: 5, kind: input, shape index: {}]
  %s6 = inlined_call_operand.hbm [shape: f32[16,32], index: 6, kind: output, shape index: {}]
  %s7 = sld [smem:[#allocation0]]
  $region34: #{tpu_custom_call.1} parent=0
    _
  %s9 = ssub.s32 1, %s7
  %s10 = scalar_select 0, %s9, %s7
  $region1: #{tpu_custom_call.1} parent=0
    #allocation2 [shape = 'u8[8192]{0}', space=vmem, size = 0x2000, scoped, tag = 'output window, operand 0, single buffered']
    #allocation3 [shape = 's32[1]{0}', space=sflag, size = 0x4, scoped, tag = 'scoped memory for tpu_custom_call.1']
    %11 = vsyncpa [#allocation3], 0
    // Predicated region
    $region2: #{tpu_custom_call.1} parent=1 // pred_check
      _
    $region3: #{tpu_custom_call.1} parent=1 // pred_check_branch
      %13 = sbr.rel (0) target = $region5
    $region4: #{tpu_custom_call.1} parent=1 // pred_region
      _
    $region5: #{tpu_custom_call.1} parent=1 // pred_fallthru
      _
    // Predicated region
    $region6: #{tpu_custom_call.1} parent=1 // pred_check
      _
    $region7: #{tpu_custom_call.1} parent=1 // pred_check_branch
      %15 = sbr.rel (0) target = $region9
    $region8: #{tpu_custom_call.1} parent=1 // pred_region
      _
    $region9: #{tpu_custom_call.1} parent=1 // pred_fallthru
      _
    // Predicated region
    $region10: #{tpu_custom_call.1} parent=1 // pred_check
      _
    $region11: #{tpu_custom_call.1} parent=1 // pred_check_branch
      %17 = sbr.rel (0) target = $region13
    $region12: #{tpu_custom_call.1} parent=1 // pred_region
      _
    $region13: #{tpu_custom_call.1} parent=1 // pred_fallthru
      _
    // Predicated region
    $region14: #{tpu_custom_call.1} parent=1 // pred_check
      _
    $region15: #{tpu_custom_call.1} parent=1 // pred_check_branch
      %19 = sbr.rel (0) target = $region17
    $region16: #{tpu_custom_call.1} parent=1 // pred_region
      _
    $region17: #{tpu_custom_call.1} parent=1 // pred_fallthru
      _
    // Predicated region
    $region18: #{tpu_custom_call.1} parent=1 // pred_check
      _
    $region19: #{tpu_custom_call.1} parent=1 // pred_check_branch
      %21 = sbr.rel (0) target = $region21
    $region20: #{tpu_custom_call.1} parent=1 // pred_region
      _
    $region21: #{tpu_custom_call.1} parent=1 // pred_fallthru
      _
    // Predicated region
    $region22: #{tpu_custom_call.1} parent=1 // pred_check
      _
    $region23: #{tpu_custom_call.1} parent=1 // pred_check_branch
      %23 = sbr.rel (0) target = $region25
    $region24: #{tpu_custom_call.1} parent=1 // pred_region
      _
    $region25: #{tpu_custom_call.1} parent=1 // pred_fallthru
      _
    %v24 = vld [vmem:[%s0] sm:$0xff]
    %v25 = vld [vmem:[%s0 + $0x8] sm:$0xff]
    %v26 = vld [vmem:[%s1] sm:$0x1]
    %v27 = vld [vmem:[%s1 + $0x1] sm:$0x1]
    %v28 = vld [vmem:[%s1 + $0x2] sm:$0x1]
    %v29 = vld [vmem:[%s1 + $0x3] sm:$0x1]
    %v30 = vld [vmem:[%s1 + $0x4] sm:$0x1]
    %v31 = vld [vmem:[%s1 + $0x5] sm:$0x1]
    %v32 = vld [vmem:[%s1 + $0x6] sm:$0x1]
    %vm33 = vcmask 261120
    %v34 = vsel %vm33, %v24, 0.0
    %35 = vadd.xlane.f32.xlu0 %v34
    %v36 = vpop.xlane.xlu0 %35
    %v37 = vsel %vm33, %v25, 0.0
    %38 = vadd.xlane.f32.xlu0 %v37
    %v39 = vpop.xlane.xlu0 %38
    %v40 = vrcp.pop 32.0
    %v41 = vmul.f32 %v36, %v40
    %v42 = vmul.f32 %v39, %v40
    %v43 = vsub.f32 %v24, %v41
    %v44 = vsub.f32 %v25, %v42
    %v45 = vmul.f32 %v43, %v43
    %v46 = vmul.f32 %v44, %v44
    %v47 = vsel %vm33, %v45, 0.0
    %48 = vadd.xlane.f32.xlu0 %v47
    %v49 = vpop.xlane.xlu0 %48
    %v50 = vsel %vm33, %v46, 0.0
    %51 = vadd.xlane.f32.xlu0 %v50
    %v52 = vpop.xlane.xlu0 %51
    %v53 = vmul.f32 %v49, %v40
    %v54 = vmul.f32 %v52, %v40
    %v55 = vadd.f32 %v53, 1e-05
    %v56 = vadd.f32 %v54, 1e-05
    %v57 = vrsqrt.pop %v55
    %v58 = vrsqrt.pop %v56
    %v59 = vmul.f32 %v43, %v57
    %v60 = vmul.f32 %v44, %v58
    %v61 = vlaneseq
    %v62 = vshrl.u32 %v61, 7
    %v63 = vsub.s32 0, %v62
    %v64 = vrot.slane %v26, %v63
    %v65 = vmul.f32 %v59, %v64
    %v66 = vmul.f32 %v60, %v64
    %v67 = vlaneseq
    %v68 = vshrl.u32 %v67, 7
    %v69 = vsub.s32 0, %v68
    %v70 = vrot.slane %v27, %v69
    %v71 = vadd.f32 %v65, %v70
    %v72 = vadd.f32 %v66, %v70
    %v73 = vld [vmem:[%s2] sm:$0xff]
    %v74 = vld [vmem:[%s2 + $0x8] sm:$0xff]
    %v75 = vld [vmem:[%s2 + $0x10] sm:$0xff]
    %v76 = vld [vmem:[%s2 + $0x18] sm:$0xff]
    %v78 = vsel %vm33, %v71, 0
    %v81 = vsel %vm33, %v72, 0
    %83 = vmatprep.subr.mxu0 0.0
    %84 = vmatpush1.msra.mxu0 0.0
    %85 = vmatprep.subr.mxu0 0.0
    %86 = vmatpush1.msra.mxu0 0.0
    %87 = vmatprep.subr.mxu0 0.0
    %88 = vmatpush1.msra.mxu0 0.0
    %89 = vmatprep.subr.mxu0 0.0
    %90 = vmatpush1.msra.mxu0 0.0
    %91 = vmatprep.subr.mxu0 0.0
    %92 = vmatpush1.msra.mxu0 0.0
    %93 = vmatprep.subr.mxu0 0.0
    %94 = vmatpush1.msra.mxu0 0.0
    %95 = vmatprep.subr.mxu0 0.0
    %96 = vmatpush1.msra.mxu0 0.0
    %97 = vmatprep.subr.mxu0 0.0
    %98 = vmatpush1.msra.mxu0 0.0
    %99 = vmatprep.subr.mxu0 0.0
    %100 = vmatpush1.msra.mxu0 0.0
    %101 = vmatprep.subr.mxu0 0.0
    %102 = vmatpush1.msra.mxu0 0.0
    %103 = vmatprep.subr.mxu0 0.0
    %104 = vmatpush1.msra.mxu0 0.0
    %105 = vmatprep.subr.mxu0 0.0
    %106 = vmatpush1.msra.mxu0 0.0
    %107 = vmatprep.subr.mxu0 0.0
    %108 = vmatpush1.msra.mxu0 %v76
    %109 = vmatprep.subr.mxu0 0.0
    %110 = vmatpush1.msra.mxu0 %v75
    %111 = vmatprep.subr.mxu0 0.0
    %112 = vmatpush1.msra.mxu0 %v74
    %113 = vmatprep.subr.mxu0 0.0
    %114 = vmatpush1.msra.mxu0 %v73
    %115 = vmatprep.subr.mxu0 0.0
    %116 = vmatpush2.msra.mxu0 0.0
    %117 = vmatprep.subr.mxu0 0.0
    %118 = vmatpush2.msra.mxu0 0.0
    %119 = vmatprep.subr.mxu0 0.0
    %120 = vmatpush2.msra.mxu0 0.0
    %121 = vmatprep.subr.mxu0 0.0
    %122 = vmatpush2.msra.mxu0 0.0
    %123 = vmatprep.subr.mxu0 0.0
    %124 = vmatpush2.msra.mxu0 0.0
    %125 = vmatprep.subr.mxu0 0.0
    %126 = vmatpush2.msra.mxu0 0.0
    %127 = vmatprep.subr.mxu0 0.0
    %128 = vmatpush2.msra.mxu0 0.0
    %129 = vmatprep.subr.mxu0 0.0
    %130 = vmatpush2.msra.mxu0 0.0
    %131 = vmatprep.subr.mxu0 0.0
    %132 = vmatpush2.msra.mxu0 0.0
    %133 = vmatprep.subr.mxu0 0.0
    %134 = vmatpush2.msra.mxu0 0.0
    %135 = vmatprep.subr.mxu0 0.0
    %136 = vmatpush2.msra.mxu0 0.0
    %137 = vmatprep.subr.mxu0 0.0
    %138 = vmatpush2.msra.mxu0 0.0
    %139 = vmatprep.subr.mxu0 0.0
    %140 = vmatpush2.msra.mxu0 0.0
    %141 = vmatprep.subr.mxu0 0.0
    %142 = vmatpush2.msra.mxu0 0.0
    %143 = vmatprep.subr.mxu0 0.0
    %144 = vmatpush2.msra.mxu0 0.0
    %145 = vmatprep.subr.mxu0 0.0
    %146 = vmatpush2.msra.mxu0 0.0
    %147 = vmatprep.mubr.f32.mxu0 0.0
    %148 = vmatmul.mubr.f32.gmra.mxu0 %v78
    %v149 = vpop.f32.mrf.mxu0
    %v150 = vadd.f32 0.0, %v149
    %v151 = vpop.f32.mrf.mxu0
    %152 = vmatprep.mubr.f32.mxu0 0.0
    %153 = vmatmul.mubr.f32.gmra.mxu0 %v81
    %v154 = vpop.f32.mrf.mxu0
    %v155 = vadd.f32 0.0, %v154
    %v156 = vpop.f32.mrf.mxu0
    %157 = vdwg.mxu0
    %160 = vrot.lane.b32.xlu0 %v150, 120
    %v161 = vpop.permute.xlu0 %160
    %162 = vrot.lane.b32.xlu0 %v155, 120
    %v163 = vpop.permute.xlu0 %162
    %166 = vrot.lane.b32.xlu0 %v150, 112
    %v167 = vpop.permute.xlu0 %166
    %168 = vrot.lane.b32.xlu0 %v155, 112
    %v169 = vpop.permute.xlu0 %168
    %172 = vrot.lane.b32.xlu0 %v150, 104
    %v173 = vpop.permute.xlu0 %172
    %174 = vrot.lane.b32.xlu0 %v155, 104
    %v175 = vpop.permute.xlu0 %174
    %v178 = vcombine.low %v150, %v167
    %v179 = vcombine.high %v150, %v167
    %v181 = vunpack.c.l.s4 1983009808
    %v182 = vunpack.c.0.s8 %v181
    %v183 = vlaneseq
    %v184 = vshrl.u32 %v183, 7
    %v185 = vsub.s32 %v182, %v184
    %v186 = vrot.slane %v178, %v185
    %v188 = vunpack.c.l.s4 1983009808
    %v189 = vunpack.c.0.s8 %v188
    %v190 = vlaneseq
    %v191 = vshrl.u32 %v190, 7
    %v192 = vsub.s32 %v189, %v191
    %v193 = vrot.slane %v179, %v192
    %v194 = vcombine.low %v161, %v173
    %v195 = vcombine.high %v161, %v173
    %v197 = vunpack.c.l.s4 1983009808
    %v198 = vunpack.c.0.s8 %v197
    %v199 = vlaneseq
    %v200 = vshrl.u32 %v199, 7
    %v201 = vsub.s32 %v198, %v200
    %v202 = vrot.slane %v194, %v201
    %v204 = vunpack.c.l.s4 1983009808
    %v205 = vunpack.c.0.s8 %v204
    %v206 = vlaneseq
    %v207 = vshrl.u32 %v206, 7
    %v208 = vsub.s32 %v205, %v207
    %v209 = vrot.slane %v195, %v208
    %v210 = vcombine.low %v186, %v202
    %v211 = vcombine.high %v186, %v202
    %v213 = vunpack.c.l.s4 1934713408
    %v214 = vunpack.c.0.s8 %v213
    %v215 = vlaneseq
    %v216 = vshrl.u32 %v215, 7
    %v217 = vsub.s32 %v214, %v216
    %v218 = vrot.slane %v210, %v217
    %v220 = vunpack.c.l.s4 1934713408
    %v221 = vunpack.c.0.s8 %v220
    %v222 = vlaneseq
    %v223 = vshrl.u32 %v222, 7
    %v224 = vsub.s32 %v221, %v223
    %v225 = vrot.slane %v211, %v224
    %v226 = vcombine.low %v193, %v209
    %v227 = vcombine.high %v193, %v209
    %v229 = vunpack.c.l.s4 1934713408
    %v230 = vunpack.c.0.s8 %v229
    %v231 = vlaneseq
    %v232 = vshrl.u32 %v231, 7
    %v233 = vsub.s32 %v230, %v232
    %v234 = vrot.slane %v226, %v233
    %v236 = vunpack.c.l.s4 1934713408
    %v237 = vunpack.c.0.s8 %v236
    %v238 = vlaneseq
    %v239 = vshrl.u32 %v238, 7
    %v240 = vsub.s32 %v237, %v239
    %v241 = vrot.slane %v227, %v240
    %v242 = vcombine.high %v218, 0.0
    %v243 = vcombine.high %v225, 0.0
    %v244 = vcombine.high %v234, 0.0
    %v245 = vcombine.high %v241, 0.0
    %v246 = vcombine.low %v155, %v169
    %v247 = vcombine.high %v155, %v169
    %v249 = vunpack.c.l.s4 1983009808
    %v250 = vunpack.c.0.s8 %v249
    %v251 = vlaneseq
    %v252 = vshrl.u32 %v251, 7
    %v253 = vsub.s32 %v250, %v252
    %v254 = vrot.slane %v246, %v253
    %v256 = vunpack.c.l.s4 1983009808
    %v257 = vunpack.c.0.s8 %v256
    %v258 = vlaneseq
    %v259 = vshrl.u32 %v258, 7
    %v260 = vsub.s32 %v257, %v259
    %v261 = vrot.slane %v247, %v260
    %v262 = vcombine.low %v163, %v175
    %v263 = vcombine.high %v163, %v175
    %v265 = vunpack.c.l.s4 1983009808
    %v266 = vunpack.c.0.s8 %v265
    %v267 = vlaneseq
    %v268 = vshrl.u32 %v267, 7
    %v269 = vsub.s32 %v266, %v268
    %v270 = vrot.slane %v262, %v269
    %v272 = vunpack.c.l.s4 1983009808
    %v273 = vunpack.c.0.s8 %v272
    %v274 = vlaneseq
    %v275 = vshrl.u32 %v274, 7
    %v276 = vsub.s32 %v273, %v275
    %v277 = vrot.slane %v263, %v276
    %v278 = vcombine.low %v254, %v270
    %v279 = vcombine.high %v254, %v270
    %v281 = vunpack.c.l.s4 1934713408
    %v282 = vunpack.c.0.s8 %v281
    %v283 = vlaneseq
    %v284 = vshrl.u32 %v283, 7
    %v285 = vsub.s32 %v282, %v284
    %v286 = vrot.slane %v278, %v285
    %v288 = vunpack.c.l.s4 1934713408
    %v289 = vunpack.c.0.s8 %v288
    %v290 = vlaneseq
    %v291 = vshrl.u32 %v290, 7
    %v292 = vsub.s32 %v289, %v291
    %v293 = vrot.slane %v279, %v292
    %v294 = vcombine.low %v261, %v277
    %v295 = vcombine.high %v261, %v277
    %v297 = vunpack.c.l.s4 1934713408
    %v298 = vunpack.c.0.s8 %v297
    %v299 = vlaneseq
    %v300 = vshrl.u32 %v299, 7
    %v301 = vsub.s32 %v298, %v300
    %v302 = vrot.slane %v294, %v301
    %v304 = vunpack.c.l.s4 1934713408
    %v305 = vunpack.c.0.s8 %v304
    %v306 = vlaneseq
    %v307 = vshrl.u32 %v306, 7
    %v308 = vsub.s32 %v305, %v307
    %v309 = vrot.slane %v295, %v308
    %v310 = vcombine.high %v286, 0.0
    %v311 = vcombine.high %v293, 0.0
    %v312 = vcombine.high %v302, 0.0
    %v313 = vcombine.high %v309, 0.0
    %v314 = vcombine.low %v218, %v225
    %v316 = vunpack.c.l.s4 1983009808
    %v317 = vunpack.c.0.s8 %v316
    %v318 = vlaneseq
    %v319 = vshrl.u32 %v318, 7
    %v320 = vsub.s32 %v317, %v319
    %v321 = vrot.slane %v314, %v320
    %v322 = vcombine.low %v242, %v243
    %v324 = vunpack.c.l.s4 1983009808
    %v325 = vunpack.c.0.s8 %v324
    %v326 = vlaneseq
    %v327 = vshrl.u32 %v326, 7
    %v328 = vsub.s32 %v325, %v327
    %v329 = vrot.slane %v322, %v328
    %v330 = vcombine.low %v234, %v241
    %v332 = vunpack.c.l.s4 1983009808
    %v333 = vunpack.c.0.s8 %v332
    %v334 = vlaneseq
    %v335 = vshrl.u32 %v334, 7
    %v336 = vsub.s32 %v333, %v335
    %v337 = vrot.slane %v330, %v336
    %v338 = vcombine.low %v244, %v245
    %v340 = vunpack.c.l.s4 1983009808
    %v341 = vunpack.c.0.s8 %v340
    %v342 = vlaneseq
    %v343 = vshrl.u32 %v342, 7
    %v344 = vsub.s32 %v341, %v343
    %v345 = vrot.slane %v338, %v344
    %v346 = vcombine.low %v321, %v329
    %v347 = vcombine.high %v321, %v329
    %v349 = vunpack.c.l.s4 1934713408
    %v350 = vunpack.c.0.s8 %v349
    %v351 = vlaneseq
    %v352 = vshrl.u32 %v351, 7
    %v353 = vsub.s32 %v350, %v352
    %v354 = vrot.slane %v346, %v353
    %v356 = vunpack.c.l.s4 1934713408
    %v357 = vunpack.c.0.s8 %v356
    %v358 = vlaneseq
    %v359 = vshrl.u32 %v358, 7
    %v360 = vsub.s32 %v357, %v359
    %v361 = vrot.slane %v347, %v360
    %v362 = vcombine.low %v337, %v345
    %v363 = vcombine.high %v337, %v345
    %v365 = vunpack.c.l.s4 1934713408
    %v366 = vunpack.c.0.s8 %v365
    %v367 = vlaneseq
    %v368 = vshrl.u32 %v367, 7
    %v369 = vsub.s32 %v366, %v368
    %v370 = vrot.slane %v362, %v369
    %v372 = vunpack.c.l.s4 1934713408
    %v373 = vunpack.c.0.s8 %v372
    %v374 = vlaneseq
    %v375 = vshrl.u32 %v374, 7
    %v376 = vsub.s32 %v373, %v375
    %v377 = vrot.slane %v363, %v376
    %v378 = vcombine.low %v354, %v370
    %v379 = vcombine.high %v354, %v370
    %v380 = vcombine.low %v361, %v377
    %v381 = vcombine.high %v361, %v377
    %v382 = vcombine.low %v286, %v293
    %v384 = vunpack.c.l.s4 1983009808
    %v385 = vunpack.c.0.s8 %v384
    %v386 = vlaneseq
    %v387 = vshrl.u32 %v386, 7
    %v388 = vsub.s32 %v385, %v387
    %v389 = vrot.slane %v382, %v388
    %v390 = vcombine.low %v310, %v311
    %v392 = vunpack.c.l.s4 1983009808
    %v393 = vunpack.c.0.s8 %v392
    %v394 = vlaneseq
    %v395 = vshrl.u32 %v394, 7
    %v396 = vsub.s32 %v393, %v395
    %v397 = vrot.slane %v390, %v396
    %v398 = vcombine.low %v302, %v309
    %v400 = vunpack.c.l.s4 1983009808
    %v401 = vunpack.c.0.s8 %v400
    %v402 = vlaneseq
    %v403 = vshrl.u32 %v402, 7
    %v404 = vsub.s32 %v401, %v403
    %v405 = vrot.slane %v398, %v404
    %v406 = vcombine.low %v312, %v313
    %v408 = vunpack.c.l.s4 1983009808
    %v409 = vunpack.c.0.s8 %v408
    %v410 = vlaneseq
    %v411 = vshrl.u32 %v410, 7
    %v412 = vsub.s32 %v409, %v411
    %v413 = vrot.slane %v406, %v412
    %v414 = vcombine.low %v389, %v397
    %v415 = vcombine.high %v389, %v397
    %v417 = vunpack.c.l.s4 1934713408
    %v418 = vunpack.c.0.s8 %v417
    %v419 = vlaneseq
    %v420 = vshrl.u32 %v419, 7
    %v421 = vsub.s32 %v418, %v420
    %v422 = vrot.slane %v414, %v421
    %v424 = vunpack.c.l.s4 1934713408
    %v425 = vunpack.c.0.s8 %v424
    %v426 = vlaneseq
    %v427 = vshrl.u32 %v426, 7
    %v428 = vsub.s32 %v425, %v427
    %v429 = vrot.slane %v415, %v428
    %v430 = vcombine.low %v405, %v413
    %v431 = vcombine.high %v405, %v413
    %v433 = vunpack.c.l.s4 1934713408
    %v434 = vunpack.c.0.s8 %v433
    %v435 = vlaneseq
    %v436 = vshrl.u32 %v435, 7
    %v437 = vsub.s32 %v434, %v436
    %v438 = vrot.slane %v430, %v437
    %v440 = vunpack.c.l.s4 1934713408
    %v441 = vunpack.c.0.s8 %v440
    %v442 = vlaneseq
    %v443 = vshrl.u32 %v442, 7
    %v444 = vsub.s32 %v441, %v443
    %v445 = vrot.slane %v431, %v444
    %v446 = vcombine.low %v422, %v438
    %v447 = vcombine.high %v422, %v438
    %v448 = vcombine.low %v429, %v445
    %v449 = vcombine.high %v429, %v445
    %450 = vrot.lane.b32.xlu0 %v150, 96
    %v451 = vpop.permute.xlu0 %450
    %452 = vrot.lane.b32.xlu0 %v155, 96
    %v453 = vpop.permute.xlu0 %452
    %454 = vrot.lane.b32.xlu0 %v161, 96
    %v455 = vpop.permute.xlu0 %454
    %456 = vrot.lane.b32.xlu0 %v163, 96
    %v457 = vpop.permute.xlu0 %456
    %458 = vrot.lane.b32.xlu0 %v167, 96
    %v459 = vpop.permute.xlu0 %458
    %460 = vrot.lane.b32.xlu0 %v169, 96
    %v461 = vpop.permute.xlu0 %460
    %462 = vrot.lane.b32.xlu0 %v173, 96
    %v463 = vpop.permute.xlu0 %462
    %464 = vrot.lane.b32.xlu0 %v175, 96
    %v465 = vpop.permute.xlu0 %464
    %v474 = vcombine.low %v451, %v459
    %v475 = vcombine.high %v451, %v459
    %v477 = vunpack.c.l.s4 1983009808
    %v478 = vunpack.c.0.s8 %v477
    %v479 = vlaneseq
    %v480 = vshrl.u32 %v479, 7
    %v481 = vsub.s32 %v478, %v480
    %v482 = vrot.slane %v474, %v481
    %v484 = vunpack.c.l.s4 1983009808
    %v485 = vunpack.c.0.s8 %v484
    %v486 = vlaneseq
    %v487 = vshrl.u32 %v486, 7
    %v488 = vsub.s32 %v485, %v487
    %v489 = vrot.slane %v475, %v488
    %v490 = vcombine.low %v455, %v463
    %v491 = vcombine.high %v455, %v463
    %v493 = vunpack.c.l.s4 1983009808
    %v494 = vunpack.c.0.s8 %v493
    %v495 = vlaneseq
    %v496 = vshrl.u32 %v495, 7
    %v497 = vsub.s32 %v494, %v496
    %v498 = vrot.slane %v490, %v497
    %v500 = vunpack.c.l.s4 1983009808
    %v501 = vunpack.c.0.s8 %v500
    %v502 = vlaneseq
    %v503 = vshrl.u32 %v502, 7
    %v504 = vsub.s32 %v501, %v503
    %v505 = vrot.slane %v491, %v504
    %v506 = vcombine.low %v482, %v498
    %v507 = vcombine.high %v482, %v498
    %v509 = vunpack.c.l.s4 1934713408
    %v510 = vunpack.c.0.s8 %v509
    %v511 = vlaneseq
    %v512 = vshrl.u32 %v511, 7
    %v513 = vsub.s32 %v510, %v512
    %v514 = vrot.slane %v506, %v513
    %v516 = vunpack.c.l.s4 1934713408
    %v517 = vunpack.c.0.s8 %v516
    %v518 = vlaneseq
    %v519 = vshrl.u32 %v518, 7
    %v520 = vsub.s32 %v517, %v519
    %v521 = vrot.slane %v507, %v520
    %v522 = vcombine.low %v489, %v505
    %v523 = vcombine.high %v489, %v505
    %v525 = vunpack.c.l.s4 1934713408
    %v526 = vunpack.c.0.s8 %v525
    %v527 = vlaneseq
    %v528 = vshrl.u32 %v527, 7
    %v529 = vsub.s32 %v526, %v528
    %v530 = vrot.slane %v522, %v529
    %v532 = vunpack.c.l.s4 1934713408
    %v533 = vunpack.c.0.s8 %v532
    %v534 = vlaneseq
    %v535 = vshrl.u32 %v534, 7
    %v536 = vsub.s32 %v533, %v535
    %v537 = vrot.slane %v523, %v536
    %v538 = vcombine.high %v514, 0.0
    %v539 = vcombine.high %v521, 0.0
    %v540 = vcombine.high %v530, 0.0
    %v541 = vcombine.high %v537, 0.0
    %v542 = vcombine.low %v453, %v461
    %v543 = vcombine.high %v453, %v461
    %v545 = vunpack.c.l.s4 1983009808
    %v546 = vunpack.c.0.s8 %v545
    %v547 = vlaneseq
    %v548 = vshrl.u32 %v547, 7
    %v549 = vsub.s32 %v546, %v548
    %v550 = vrot.slane %v542, %v549
    %v552 = vunpack.c.l.s4 1983009808
    %v553 = vunpack.c.0.s8 %v552
    %v554 = vlaneseq
    %v555 = vshrl.u32 %v554, 7
    %v556 = vsub.s32 %v553, %v555
    %v557 = vrot.slane %v543, %v556
    %v558 = vcombine.low %v457, %v465
    %v559 = vcombine.high %v457, %v465
    %v561 = vunpack.c.l.s4 1983009808
    %v562 = vunpack.c.0.s8 %v561
    %v563 = vlaneseq
    %v564 = vshrl.u32 %v563, 7
    %v565 = vsub.s32 %v562, %v564
    %v566 = vrot.slane %v558, %v565
    %v568 = vunpack.c.l.s4 1983009808
    %v569 = vunpack.c.0.s8 %v568
    %v570 = vlaneseq
    %v571 = vshrl.u32 %v570, 7
    %v572 = vsub.s32 %v569, %v571
    %v573 = vrot.slane %v559, %v572
    %v574 = vcombine.low %v550, %v566
    %v575 = vcombine.high %v550, %v566
    %v577 = vunpack.c.l.s4 1934713408
    %v578 = vunpack.c.0.s8 %v577
    %v579 = vlaneseq
    %v580 = vshrl.u32 %v579, 7
    %v581 = vsub.s32 %v578, %v580
    %v582 = vrot.slane %v574, %v581
    %v584 = vunpack.c.l.s4 1934713408
    %v585 = vunpack.c.0.s8 %v584
    %v586 = vlaneseq
    %v587 = vshrl.u32 %v586, 7
    %v588 = vsub.s32 %v585, %v587
    %v589 = vrot.slane %v575, %v588
    %v590 = vcombine.low %v557, %v573
    %v591 = vcombine.high %v557, %v573
    %v593 = vunpack.c.l.s4 1934713408
    %v594 = vunpack.c.0.s8 %v593
    %v595 = vlaneseq
    %v596 = vshrl.u32 %v595, 7
    %v597 = vsub.s32 %v594, %v596
    %v598 = vrot.slane %v590, %v597
    %v600 = vunpack.c.l.s4 1934713408
    %v601 = vunpack.c.0.s8 %v600
    %v602 = vlaneseq
    %v603 = vshrl.u32 %v602, 7
    %v604 = vsub.s32 %v601, %v603
    %v605 = vrot.slane %v591, %v604
    %v606 = vcombine.high %v582, 0.0
    %v607 = vcombine.high %v589, 0.0
    %v608 = vcombine.high %v598, 0.0
    %v609 = vcombine.high %v605, 0.0
    %v610 = vcombine.low %v514, %v521
    %v612 = vunpack.c.l.s4 1983009808
    %v613 = vunpack.c.0.s8 %v612
    %v614 = vlaneseq
    %v615 = vshrl.u32 %v614, 7
    %v616 = vsub.s32 %v613, %v615
    %v617 = vrot.slane %v610, %v616
    %v618 = vcombine.low %v538, %v539
    %v620 = vunpack.c.l.s4 1983009808
    %v621 = vunpack.c.0.s8 %v620
    %v622 = vlaneseq
    %v623 = vshrl.u32 %v622, 7
    %v624 = vsub.s32 %v621, %v623
    %v625 = vrot.slane %v618, %v624
    %v626 = vcombine.low %v530, %v537
    %v628 = vunpack.c.l.s4 1983009808
    %v629 = vunpack.c.0.s8 %v628
    %v630 = vlaneseq
    %v631 = vshrl.u32 %v630, 7
    %v632 = vsub.s32 %v629, %v631
    %v633 = vrot.slane %v626, %v632
    %v634 = vcombine.low %v540, %v541
    %v636 = vunpack.c.l.s4 1983009808
    %v637 = vunpack.c.0.s8 %v636
    %v638 = vlaneseq
    %v639 = vshrl.u32 %v638, 7
    %v640 = vsub.s32 %v637, %v639
    %v641 = vrot.slane %v634, %v640
    %v642 = vcombine.low %v617, %v625
    %v643 = vcombine.high %v617, %v625
    %v645 = vunpack.c.l.s4 1934713408
    %v646 = vunpack.c.0.s8 %v645
    %v647 = vlaneseq
    %v648 = vshrl.u32 %v647, 7
    %v649 = vsub.s32 %v646, %v648
    %v650 = vrot.slane %v642, %v649
    %v652 = vunpack.c.l.s4 1934713408
    %v653 = vunpack.c.0.s8 %v652
    %v654 = vlaneseq
    %v655 = vshrl.u32 %v654, 7
    %v656 = vsub.s32 %v653, %v655
    %v657 = vrot.slane %v643, %v656
    %v658 = vcombine.low %v633, %v641
    %v659 = vcombine.high %v633, %v641
    %v661 = vunpack.c.l.s4 1934713408
    %v662 = vunpack.c.0.s8 %v661
    %v663 = vlaneseq
    %v664 = vshrl.u32 %v663, 7
    %v665 = vsub.s32 %v662, %v664
    %v666 = vrot.slane %v658, %v665
    %v668 = vunpack.c.l.s4 1934713408
    %v669 = vunpack.c.0.s8 %v668
    %v670 = vlaneseq
    %v671 = vshrl.u32 %v670, 7
    %v672 = vsub.s32 %v669, %v671
    %v673 = vrot.slane %v659, %v672
    %v674 = vcombine.low %v650, %v666
    %v675 = vcombine.high %v650, %v666
    %v676 = vcombine.low %v657, %v673
    %v677 = vcombine.high %v657, %v673
    %v678 = vcombine.low %v582, %v589
    %v680 = vunpack.c.l.s4 1983009808
    %v681 = vunpack.c.0.s8 %v680
    %v682 = vlaneseq
    %v683 = vshrl.u32 %v682, 7
    %v684 = vsub.s32 %v681, %v683
    %v685 = vrot.slane %v678, %v684
    %v686 = vcombine.low %v606, %v607
    %v688 = vunpack.c.l.s4 1983009808
    %v689 = vunpack.c.0.s8 %v688
    %v690 = vlaneseq
    %v691 = vshrl.u32 %v690, 7
    %v692 = vsub.s32 %v689, %v691
    %v693 = vrot.slane %v686, %v692
    %v694 = vcombine.low %v598, %v605
    %v696 = vunpack.c.l.s4 1983009808
    %v697 = vunpack.c.0.s8 %v696
    %v698 = vlaneseq
    %v699 = vshrl.u32 %v698, 7
    %v700 = vsub.s32 %v697, %v699
    %v701 = vrot.slane %v694, %v700
    %v702 = vcombine.low %v608, %v609
    %v704 = vunpack.c.l.s4 1983009808
    %v705 = vunpack.c.0.s8 %v704
    %v706 = vlaneseq
    %v707 = vshrl.u32 %v706, 7
    %v708 = vsub.s32 %v705, %v707
    %v709 = vrot.slane %v702, %v708
    %v710 = vcombine.low %v685, %v693
    %v711 = vcombine.high %v685, %v693
    %v713 = vunpack.c.l.s4 1934713408
    %v714 = vunpack.c.0.s8 %v713
    %v715 = vlaneseq
    %v716 = vshrl.u32 %v715, 7
    %v717 = vsub.s32 %v714, %v716
    %v718 = vrot.slane %v710, %v717
    %v720 = vunpack.c.l.s4 1934713408
    %v721 = vunpack.c.0.s8 %v720
    %v722 = vlaneseq
    %v723 = vshrl.u32 %v722, 7
    %v724 = vsub.s32 %v721, %v723
    %v725 = vrot.slane %v711, %v724
    %v726 = vcombine.low %v701, %v709
    %v727 = vcombine.high %v701, %v709
    %v729 = vunpack.c.l.s4 1934713408
    %v730 = vunpack.c.0.s8 %v729
    %v731 = vlaneseq
    %v732 = vshrl.u32 %v731, 7
    %v733 = vsub.s32 %v730, %v732
    %v734 = vrot.slane %v726, %v733
    %v736 = vunpack.c.l.s4 1934713408
    %v737 = vunpack.c.0.s8 %v736
    %v738 = vlaneseq
    %v739 = vshrl.u32 %v738, 7
    %v740 = vsub.s32 %v737, %v739
    %v741 = vrot.slane %v727, %v740
    %v742 = vcombine.low %v718, %v734
    %v743 = vcombine.high %v718, %v734
    %v744 = vcombine.low %v725, %v741
    %v745 = vcombine.high %v725, %v741
    %746 = vrot.lane.b32.xlu0 %v150, 64
    %v747 = vpop.permute.xlu0 %746
    %748 = vrot.lane.b32.xlu0 %v155, 64
    %v749 = vpop.permute.xlu0 %748
    %750 = vrot.lane.b32.xlu0 %v161, 64
    %v751 = vpop.permute.xlu0 %750
    %752 = vrot.lane.b32.xlu0 %v163, 64
    %v753 = vpop.permute.xlu0 %752
    %754 = vrot.lane.b32.xlu0 %v167, 64
    %v755 = vpop.permute.xlu0 %754
    %756 = vrot.lane.b32.xlu0 %v169, 64
    %v757 = vpop.permute.xlu0 %756
    %758 = vrot.lane.b32.xlu0 %v173, 64
    %v759 = vpop.permute.xlu0 %758
    %760 = vrot.lane.b32.xlu0 %v175, 64
    %v761 = vpop.permute.xlu0 %760
    %v770 = vcombine.low %v747, %v755
    %v771 = vcombine.high %v747, %v755
    %v773 = vunpack.c.l.s4 1983009808
    %v774 = vunpack.c.0.s8 %v773
    %v775 = vlaneseq
    %v776 = vshrl.u32 %v775, 7
    %v777 = vsub.s32 %v774, %v776
    %v778 = vrot.slane %v770, %v777
    %v780 = vunpack.c.l.s4 1983009808
    %v781 = vunpack.c.0.s8 %v780
    %v782 = vlaneseq
    %v783 = vshrl.u32 %v782, 7
    %v784 = vsub.s32 %v781, %v783
    %v785 = vrot.slane %v771, %v784
    %v786 = vcombine.low %v751, %v759
    %v787 = vcombine.high %v751, %v759
    %v789 = vunpack.c.l.s4 1983009808
    %v790 = vunpack.c.0.s8 %v789
    %v791 = vlaneseq
    %v792 = vshrl.u32 %v791, 7
    %v793 = vsub.s32 %v790, %v792
    %v794 = vrot.slane %v786, %v793
    %v796 = vunpack.c.l.s4 1983009808
    %v797 = vunpack.c.0.s8 %v796
    %v798 = vlaneseq
    %v799 = vshrl.u32 %v798, 7
    %v800 = vsub.s32 %v797, %v799
    %v801 = vrot.slane %v787, %v800
    %v802 = vcombine.low %v778, %v794
    %v803 = vcombine.high %v778, %v794
    %v805 = vunpack.c.l.s4 1934713408
    %v806 = vunpack.c.0.s8 %v805
    %v807 = vlaneseq
    %v808 = vshrl.u32 %v807, 7
    %v809 = vsub.s32 %v806, %v808
    %v810 = vrot.slane %v802, %v809
    %v812 = vunpack.c.l.s4 1934713408
    %v813 = vunpack.c.0.s8 %v812
    %v814 = vlaneseq
    %v815 = vshrl.u32 %v814, 7
    %v816 = vsub.s32 %v813, %v815
    %v817 = vrot.slane %v803, %v816
    %v818 = vcombine.low %v785, %v801
    %v819 = vcombine.high %v785, %v801
    %v821 = vunpack.c.l.s4 1934713408
    %v822 = vunpack.c.0.s8 %v821
    %v823 = vlaneseq
    %v824 = vshrl.u32 %v823, 7
    %v825 = vsub.s32 %v822, %v824
    %v826 = vrot.slane %v818, %v825
    %v828 = vunpack.c.l.s4 1934713408
    %v829 = vunpack.c.0.s8 %v828
    %v830 = vlaneseq
    %v831 = vshrl.u32 %v830, 7
    %v832 = vsub.s32 %v829, %v831
    %v833 = vrot.slane %v819, %v832
    %v834 = vcombine.high %v810, 0.0
    %v835 = vcombine.high %v817, 0.0
    %v836 = vcombine.high %v826, 0.0
    %v837 = vcombine.high %v833, 0.0
    %v838 = vcombine.low %v749, %v757
    %v839 = vcombine.high %v749, %v757
    %v841 = vunpack.c.l.s4 1983009808
    %v842 = vunpack.c.0.s8 %v841
    %v843 = vlaneseq
    %v844 = vshrl.u32 %v843, 7
    %v845 = vsub.s32 %v842, %v844
    %v846 = vrot.slane %v838, %v845
    %v848 = vunpack.c.l.s4 1983009808
    %v849 = vunpack.c.0.s8 %v848
    %v850 = vlaneseq
    %v851 = vshrl.u32 %v850, 7
    %v852 = vsub.s32 %v849, %v851
    %v853 = vrot.slane %v839, %v852
    %v854 = vcombine.low %v753, %v761
    %v855 = vcombine.high %v753, %v761
    %v857 = vunpack.c.l.s4 1983009808
    %v858 = vunpack.c.0.s8 %v857
    %v859 = vlaneseq
    %v860 = vshrl.u32 %v859, 7
    %v861 = vsub.s32 %v858, %v860
    %v862 = vrot.slane %v854, %v861
    %v864 = vunpack.c.l.s4 1983009808
    %v865 = vunpack.c.0.s8 %v864
    %v866 = vlaneseq
    %v867 = vshrl.u32 %v866, 7
    %v868 = vsub.s32 %v865, %v867
    %v869 = vrot.slane %v855, %v868
    %v870 = vcombine.low %v846, %v862
    %v871 = vcombine.high %v846, %v862
    %v873 = vunpack.c.l.s4 1934713408
    %v874 = vunpack.c.0.s8 %v873
    %v875 = vlaneseq
    %v876 = vshrl.u32 %v875, 7
    %v877 = vsub.s32 %v874, %v876
    %v878 = vrot.slane %v870, %v877
    %v880 = vunpack.c.l.s4 1934713408
    %v881 = vunpack.c.0.s8 %v880
    %v882 = vlaneseq
    %v883 = vshrl.u32 %v882, 7
    %v884 = vsub.s32 %v881, %v883
    %v885 = vrot.slane %v871, %v884
    %v886 = vcombine.low %v853, %v869
    %v887 = vcombine.high %v853, %v869
    %v889 = vunpack.c.l.s4 1934713408
    %v890 = vunpack.c.0.s8 %v889
    %v891 = vlaneseq
    %v892 = vshrl.u32 %v891, 7
    %v893 = vsub.s32 %v890, %v892
    %v894 = vrot.slane %v886, %v893
    %v896 = vunpack.c.l.s4 1934713408
    %v897 = vunpack.c.0.s8 %v896
    %v898 = vlaneseq
    %v899 = vshrl.u32 %v898, 7
    %v900 = vsub.s32 %v897, %v899
    %v901 = vrot.slane %v887, %v900
    %v902 = vcombine.high %v878, 0.0
    %v903 = vcombine.high %v885, 0.0
    %v904 = vcombine.high %v894, 0.0
    %v905 = vcombine.high %v901, 0.0
    %v906 = vcombine.low %v810, %v817
    %v908 = vunpack.c.l.s4 1983009808
    %v909 = vunpack.c.0.s8 %v908
    %v910 = vlaneseq
    %v911 = vshrl.u32 %v910, 7
    %v912 = vsub.s32 %v909, %v911
    %v913 = vrot.slane %v906, %v912
    %v914 = vcombine.low %v834, %v835
    %v916 = vunpack.c.l.s4 1983009808
    %v917 = vunpack.c.0.s8 %v916
    %v918 = vlaneseq
    %v919 = vshrl.u32 %v918, 7
    %v920 = vsub.s32 %v917, %v919
    %v921 = vrot.slane %v914, %v920
    %v922 = vcombine.low %v826, %v833
    %v924 = vunpack.c.l.s4 1983009808
    %v925 = vunpack.c.0.s8 %v924
    %v926 = vlaneseq
    %v927 = vshrl.u32 %v926, 7
    %v928 = vsub.s32 %v925, %v927
    %v929 = vrot.slane %v922, %v928
    %v930 = vcombine.low %v836, %v837
    %v932 = vunpack.c.l.s4 1983009808
    %v933 = vunpack.c.0.s8 %v932
    %v934 = vlaneseq
    %v935 = vshrl.u32 %v934, 7
    %v936 = vsub.s32 %v933, %v935
    %v937 = vrot.slane %v930, %v936
    %v938 = vcombine.low %v913, %v921
    %v939 = vcombine.high %v913, %v921
    %v941 = vunpack.c.l.s4 1934713408
    %v942 = vunpack.c.0.s8 %v941
    %v943 = vlaneseq
    %v944 = vshrl.u32 %v943, 7
    %v945 = vsub.s32 %v942, %v944
    %v946 = vrot.slane %v938, %v945
    %v948 = vunpack.c.l.s4 1934713408
    %v949 = vunpack.c.0.s8 %v948
    %v950 = vlaneseq
    %v951 = vshrl.u32 %v950, 7
    %v952 = vsub.s32 %v949, %v951
    %v953 = vrot.slane %v939, %v952
    %v954 = vcombine.low %v929, %v937
    %v955 = vcombine.high %v929, %v937
    %v957 = vunpack.c.l.s4 1934713408
    %v958 = vunpack.c.0.s8 %v957
    %v959 = vlaneseq
    %v960 = vshrl.u32 %v959, 7
    %v961 = vsub.s32 %v958, %v960
    %v962 = vrot.slane %v954, %v961
    %v964 = vunpack.c.l.s4 1934713408
    %v965 = vunpack.c.0.s8 %v964
    %v966 = vlaneseq
    %v967 = vshrl.u32 %v966, 7
    %v968 = vsub.s32 %v965, %v967
    %v969 = vrot.slane %v955, %v968
    %v970 = vcombine.low %v946, %v962
    %v971 = vcombine.high %v946, %v962
    %v972 = vcombine.low %v953, %v969
    %v973 = vcombine.high %v953, %v969
    %v974 = vcombine.low %v878, %v885
    %v976 = vunpack.c.l.s4 1983009808
    %v977 = vunpack.c.0.s8 %v976
    %v978 = vlaneseq
    %v979 = vshrl.u32 %v978, 7
    %v980 = vsub.s32 %v977, %v979
    %v981 = vrot.slane %v974, %v980
    %v982 = vcombine.low %v902, %v903
    %v984 = vunpack.c.l.s4 1983009808
    %v985 = vunpack.c.0.s8 %v984
    %v986 = vlaneseq
    %v987 = vshrl.u32 %v986, 7
    %v988 = vsub.s32 %v985, %v987
    %v989 = vrot.slane %v982, %v988
    %v990 = vcombine.low %v894, %v901
    %v992 = vunpack.c.l.s4 1983009808
    %v993 = vunpack.c.0.s8 %v992
    %v994 = vlaneseq
    %v995 = vshrl.u32 %v994, 7
    %v996 = vsub.s32 %v993, %v995
    %v997 = vrot.slane %v990, %v996
    %v998 = vcombine.low %v904, %v905
    %v1000 = vunpack.c.l.s4 1983009808
    %v1001 = vunpack.c.0.s8 %v1000
    %v1002 = vlaneseq
    %v1003 = vshrl.u32 %v1002, 7
    %v1004 = vsub.s32 %v1001, %v1003
    %v1005 = vrot.slane %v998, %v1004
    %v1006 = vcombine.low %v981, %v989
    %v1007 = vcombine.high %v981, %v989
    %v1009 = vunpack.c.l.s4 1934713408
    %v1010 = vunpack.c.0.s8 %v1009
    %v1011 = vlaneseq
    %v1012 = vshrl.u32 %v1011, 7
    %v1013 = vsub.s32 %v1010, %v1012
    %v1014 = vrot.slane %v1006, %v1013
    %v1016 = vunpack.c.l.s4 1934713408
    %v1017 = vunpack.c.0.s8 %v1016
    %v1018 = vlaneseq
    %v1019 = vshrl.u32 %v1018, 7
    %v1020 = vsub.s32 %v1017, %v1019
    %v1021 = vrot.slane %v1007, %v1020
    %v1022 = vcombine.low %v997, %v1005
    %v1023 = vcombine.high %v997, %v1005
    %v1025 = vunpack.c.l.s4 1934713408
    %v1026 = vunpack.c.0.s8 %v1025
    %v1027 = vlaneseq
    %v1028 = vshrl.u32 %v1027, 7
    %v1029 = vsub.s32 %v1026, %v1028
    %v1030 = vrot.slane %v1022, %v1029
    %v1032 = vunpack.c.l.s4 1934713408
    %v1033 = vunpack.c.0.s8 %v1032
    %v1034 = vlaneseq
    %v1035 = vshrl.u32 %v1034, 7
    %v1036 = vsub.s32 %v1033, %v1035
    %v1037 = vrot.slane %v1023, %v1036
    %v1038 = vcombine.low %v1014, %v1030
    %v1039 = vcombine.high %v1014, %v1030
    %v1040 = vcombine.low %v1021, %v1037
    %v1041 = vcombine.high %v1021, %v1037
    %vm1042 = vcmask 64512
    %v1044 = vsel %vm1042, %v378, 0
    %v1047 = vsel %vm1042, %v674, 0
    %1049 = vmatprep.subr.mxu0 0.0
    %1050 = vmatpush1.xpose.msra.mxu0 0.0
    %1051 = vmatprep.subr.mxu0 0.0
    %1052 = vmatpush1.xpose.msra.mxu0 0.0
    %1053 = vmatprep.subr.mxu0 0.0
    %1054 = vmatpush1.xpose.msra.mxu0 0.0
    %1055 = vmatprep.subr.mxu0 0.0
    %1056 = vmatpush1.xpose.msra.mxu0 0.0
    %1057 = vmatprep.subr.mxu0 0.0
    %1058 = vmatpush1.xpose.msra.mxu0 0.0
    %1059 = vmatprep.subr.mxu0 0.0
    %1060 = vmatpush1.xpose.msra.mxu0 0.0
    %1061 = vmatprep.subr.mxu0 0.0
    %1062 = vmatpush1.xpose.msra.mxu0 0.0
    %1063 = vmatprep.subr.mxu0 0.0
    %1064 = vmatpush1.xpose.msra.mxu0 0.0
    %1065 = vmatprep.subr.mxu0 0.0
    %1066 = vmatpush1.xpose.msra.mxu0 0.0
    %1067 = vmatprep.subr.mxu0 0.0
    %1068 = vmatpush1.xpose.msra.mxu0 0.0
    %1069 = vmatprep.subr.mxu0 0.0
    %1070 = vmatpush1.xpose.msra.mxu0 0.0
    %1071 = vmatprep.subr.mxu0 0.0
    %1072 = vmatpush1.xpose.msra.mxu0 0.0
    %1073 = vmatprep.subr.mxu0 0.0
    %1074 = vmatpush1.xpose.msra.mxu0 0.0
    %1075 = vmatprep.subr.mxu0 0.0
    %1076 = vmatpush1.xpose.msra.mxu0 0.0
    %1077 = vmatprep.subr.mxu0 0.0
    %1078 = vmatpush1.xpose.msra.mxu0 0.0
    %1079 = vmatprep.subr.mxu0 0.0
    %1080 = vmatpush1.xpose.msra.mxu0 %v1047
    %1081 = vmatprep.subr.mxu0 0.0
    %1082 = vmatpush2.xpose.msra.mxu0 0.0
    %1083 = vmatprep.subr.mxu0 0.0
    %1084 = vmatpush2.xpose.msra.mxu0 0.0
    %1085 = vmatprep.subr.mxu0 0.0
    %1086 = vmatpush2.xpose.msra.mxu0 0.0
    %1087 = vmatprep.subr.mxu0 0.0
    %1088 = vmatpush2.xpose.msra.mxu0 0.0
    %1089 = vmatprep.subr.mxu0 0.0
    %1090 = vmatpush2.xpose.msra.mxu0 0.0
    %1091 = vmatprep.subr.mxu0 0.0
    %1092 = vmatpush2.xpose.msra.mxu0 0.0
    %1093 = vmatprep.subr.mxu0 0.0
    %1094 = vmatpush2.xpose.msra.mxu0 0.0
    %1095 = vmatprep.subr.mxu0 0.0
    %1096 = vmatpush2.xpose.msra.mxu0 0.0
    %1097 = vmatprep.subr.mxu0 0.0
    %1098 = vmatpush2.xpose.msra.mxu0 0.0
    %1099 = vmatprep.subr.mxu0 0.0
    %1100 = vmatpush2.xpose.msra.mxu0 0.0
    %1101 = vmatprep.subr.mxu0 0.0
    %1102 = vmatpush2.xpose.msra.mxu0 0.0
    %1103 = vmatprep.subr.mxu0 0.0
    %1104 = vmatpush2.xpose.msra.mxu0 0.0
    %1105 = vmatprep.subr.mxu0 0.0
    %1106 = vmatpush2.xpose.msra.mxu0 0.0
    %1107 = vmatprep.subr.mxu0 0.0
    %1108 = vmatpush2.xpose.msra.mxu0 0.0
    %1109 = vmatprep.subr.mxu0 0.0
    %1110 = vmatpush2.xpose.msra.mxu0 0.0
    %1111 = vmatprep.subr.mxu0 0.0
    %1112 = vmatpush2.xpose.msra.mxu0 0.0
    %1113 = vmatprep.mubr.f32.mxu0 0.0
    %1114 = vmatmul.mubr.f32.gmra.mxu0 %v1044
    %v1115 = vpop.f32.mrf.mxu0
    %v1116 = vadd.f32 0.0, %v1115
    %v1117 = vpop.f32.mrf.mxu0
    %1118 = vdwg.mxu0
    %v1120 = vsel %vm1042, %v379, 0
    %v1123 = vsel %vm1042, %v675, 0
    %1125 = vmatprep.subr.mxu0 0.0
    %1126 = vmatpush1.xpose.msra.mxu0 0.0
    %1127 = vmatprep.subr.mxu0 0.0
    %1128 = vmatpush1.xpose.msra.mxu0 0.0
    %1129 = vmatprep.subr.mxu0 0.0
    %1130 = vmatpush1.xpose.msra.mxu0 0.0
    %1131 = vmatprep.subr.mxu0 0.0
    %1132 = vmatpush1.xpose.msra.mxu0 0.0
    %1133 = vmatprep.subr.mxu0 0.0
    %1134 = vmatpush1.xpose.msra.mxu0 0.0
    %1135 = vmatprep.subr.mxu0 0.0
    %1136 = vmatpush1.xpose.msra.mxu0 0.0
    %1137 = vmatprep.subr.mxu0 0.0
    %1138 = vmatpush1.xpose.msra.mxu0 0.0
    %1139 = vmatprep.subr.mxu0 0.0
    %1140 = vmatpush1.xpose.msra.mxu0 0.0
    %1141 = vmatprep.subr.mxu0 0.0
    %1142 = vmatpush1.xpose.msra.mxu0 0.0
    %1143 = vmatprep.subr.mxu0 0.0
    %1144 = vmatpush1.xpose.msra.mxu0 0.0
    %1145 = vmatprep.subr.mxu0 0.0
    %1146 = vmatpush1.xpose.msra.mxu0 0.0
    %1147 = vmatprep.subr.mxu0 0.0
    %1148 = vmatpush1.xpose.msra.mxu0 0.0
    %1149 = vmatprep.subr.mxu0 0.0
    %1150 = vmatpush1.xpose.msra.mxu0 0.0
    %1151 = vmatprep.subr.mxu0 0.0
    %1152 = vmatpush1.xpose.msra.mxu0 0.0
    %1153 = vmatprep.subr.mxu0 0.0
    %1154 = vmatpush1.xpose.msra.mxu0 0.0
    %1155 = vmatprep.subr.mxu0 0.0
    %1156 = vmatpush1.xpose.msra.mxu0 %v1123
    %1157 = vmatprep.subr.mxu0 0.0
    %1158 = vmatpush2.xpose.msra.mxu0 0.0
    %1159 = vmatprep.subr.mxu0 0.0
    %1160 = vmatpush2.xpose.msra.mxu0 0.0
    %1161 = vmatprep.subr.mxu0 0.0
    %1162 = vmatpush2.xpose.msra.mxu0 0.0
    %1163 = vmatprep.subr.mxu0 0.0
    %1164 = vmatpush2.xpose.msra.mxu0 0.0
    %1165 = vmatprep.subr.mxu0 0.0
    %1166 = vmatpush2.xpose.msra.mxu0 0.0
    %1167 = vmatprep.subr.mxu0 0.0
    %1168 = vmatpush2.xpose.msra.mxu0 0.0
    %1169 = vmatprep.subr.mxu0 0.0
    %1170 = vmatpush2.xpose.msra.mxu0 0.0
    %1171 = vmatprep.subr.mxu0 0.0
    %1172 = vmatpush2.xpose.msra.mxu0 0.0
    %1173 = vmatprep.subr.mxu0 0.0
    %1174 = vmatpush2.xpose.msra.mxu0 0.0
    %1175 = vmatprep.subr.mxu0 0.0
    %1176 = vmatpush2.xpose.msra.mxu0 0.0
    %1177 = vmatprep.subr.mxu0 0.0
    %1178 = vmatpush2.xpose.msra.mxu0 0.0
    %1179 = vmatprep.subr.mxu0 0.0
    %1180 = vmatpush2.xpose.msra.mxu0 0.0
    %1181 = vmatprep.subr.mxu0 0.0
    %1182 = vmatpush2.xpose.msra.mxu0 0.0
    %1183 = vmatprep.subr.mxu0 0.0
    %1184 = vmatpush2.xpose.msra.mxu0 0.0
    %1185 = vmatprep.subr.mxu0 0.0
    %1186 = vmatpush2.xpose.msra.mxu0 0.0
    %1187 = vmatprep.subr.mxu0 0.0
    %1188 = vmatpush2.xpose.msra.mxu0 0.0
    %1189 = vmatprep.mubr.f32.mxu0 0.0
    %1190 = vmatmul.mubr.f32.gmra.mxu0 %v1120
    %v1191 = vpop.f32.mrf.mxu0
    %v1192 = vadd.f32 0.0, %v1191
    %v1193 = vpop.f32.mrf.mxu0
    %1194 = vdwg.mxu0
    %v1196 = vsel %vm1042, %v380, 0
    %v1199 = vsel %vm1042, %v676, 0
    %1201 = vmatprep.subr.mxu0 0.0
    %1202 = vmatpush1.xpose.msra.mxu0 0.0
    %1203 = vmatprep.subr.mxu0 0.0
    %1204 = vmatpush1.xpose.msra.mxu0 0.0
    %1205 = vmatprep.subr.mxu0 0.0
    %1206 = vmatpush1.xpose.msra.mxu0 0.0
    %1207 = vmatprep.subr.mxu0 0.0
    %1208 = vmatpush1.xpose.msra.mxu0 0.0
    %1209 = vmatprep.subr.mxu0 0.0
    %1210 = vmatpush1.xpose.msra.mxu0 0.0
    %1211 = vmatprep.subr.mxu0 0.0
    %1212 = vmatpush1.xpose.msra.mxu0 0.0
    %1213 = vmatprep.subr.mxu0 0.0
    %1214 = vmatpush1.xpose.msra.mxu0 0.0
    %1215 = vmatprep.subr.mxu0 0.0
    %1216 = vmatpush1.xpose.msra.mxu0 0.0
    %1217 = vmatprep.subr.mxu0 0.0
    %1218 = vmatpush1.xpose.msra.mxu0 0.0
    %1219 = vmatprep.subr.mxu0 0.0
    %1220 = vmatpush1.xpose.msra.mxu0 0.0
    %1221 = vmatprep.subr.mxu0 0.0
    %1222 = vmatpush1.xpose.msra.mxu0 0.0
    %1223 = vmatprep.subr.mxu0 0.0
    %1224 = vmatpush1.xpose.msra.mxu0 0.0
    %1225 = vmatprep.subr.mxu0 0.0
    %1226 = vmatpush1.xpose.msra.mxu0 0.0
    %1227 = vmatprep.subr.mxu0 0.0
    %1228 = vmatpush1.xpose.msra.mxu0 0.0
    %1229 = vmatprep.subr.mxu0 0.0
    %1230 = vmatpush1.xpose.msra.mxu0 0.0
    %1231 = vmatprep.subr.mxu0 0.0
    %1232 = vmatpush1.xpose.msra.mxu0 %v1199
    %1233 = vmatprep.subr.mxu0 0.0
    %1234 = vmatpush2.xpose.msra.mxu0 0.0
    %1235 = vmatprep.subr.mxu0 0.0
    %1236 = vmatpush2.xpose.msra.mxu0 0.0
    %1237 = vmatprep.subr.mxu0 0.0
    %1238 = vmatpush2.xpose.msra.mxu0 0.0
    %1239 = vmatprep.subr.mxu0 0.0
    %1240 = vmatpush2.xpose.msra.mxu0 0.0
    %1241 = vmatprep.subr.mxu0 0.0
    %1242 = vmatpush2.xpose.msra.mxu0 0.0
    %1243 = vmatprep.subr.mxu0 0.0
    %1244 = vmatpush2.xpose.msra.mxu0 0.0
    %1245 = vmatprep.subr.mxu0 0.0
    %1246 = vmatpush2.xpose.msra.mxu0 0.0
    %1247 = vmatprep.subr.mxu0 0.0
    %1248 = vmatpush2.xpose.msra.mxu0 0.0
    %1249 = vmatprep.subr.mxu0 0.0
    %1250 = vmatpush2.xpose.msra.mxu0 0.0
    %1251 = vmatprep.subr.mxu0 0.0
    %1252 = vmatpush2.xpose.msra.mxu0 0.0
    %1253 = vmatprep.subr.mxu0 0.0
    %1254 = vmatpush2.xpose.msra.mxu0 0.0
    %1255 = vmatprep.subr.mxu0 0.0
    %1256 = vmatpush2.xpose.msra.mxu0 0.0
    %1257 = vmatprep.subr.mxu0 0.0
    %1258 = vmatpush2.xpose.msra.mxu0 0.0
    %1259 = vmatprep.subr.mxu0 0.0
    %1260 = vmatpush2.xpose.msra.mxu0 0.0
    %1261 = vmatprep.subr.mxu0 0.0
    %1262 = vmatpush2.xpose.msra.mxu0 0.0
    %1263 = vmatprep.subr.mxu0 0.0
    %1264 = vmatpush2.xpose.msra.mxu0 0.0
    %1265 = vmatprep.mubr.f32.mxu0 0.0
    %1266 = vmatmul.mubr.f32.gmra.mxu0 %v1196
    %v1267 = vpop.f32.mrf.mxu0
    %v1268 = vadd.f32 0.0, %v1267
    %v1269 = vpop.f32.mrf.mxu0
    %1270 = vdwg.mxu0
    %v1272 = vsel %vm1042, %v381, 0
    %v1275 = vsel %vm1042, %v677, 0
    %1277 = vmatprep.subr.mxu0 0.0
    %1278 = vmatpush1.xpose.msra.mxu0 0.0
    %1279 = vmatprep.subr.mxu0 0.0
    %1280 = vmatpush1.xpose.msra.mxu0 0.0
    %1281 = vmatprep.subr.mxu0 0.0
    %1282 = vmatpush1.xpose.msra.mxu0 0.0
    %1283 = vmatprep.subr.mxu0 0.0
    %1284 = vmatpush1.xpose.msra.mxu0 0.0
    %1285 = vmatprep.subr.mxu0 0.0
    %1286 = vmatpush1.xpose.msra.mxu0 0.0
    %1287 = vmatprep.subr.mxu0 0.0
    %1288 = vmatpush1.xpose.msra.mxu0 0.0
    %1289 = vmatprep.subr.mxu0 0.0
    %1290 = vmatpush1.xpose.msra.mxu0 0.0
    %1291 = vmatprep.subr.mxu0 0.0
    %1292 = vmatpush1.xpose.msra.mxu0 0.0
    %1293 = vmatprep.subr.mxu0 0.0
    %1294 = vmatpush1.xpose.msra.mxu0 0.0
    %1295 = vmatprep.subr.mxu0 0.0
    %1296 = vmatpush1.xpose.msra.mxu0 0.0
    %1297 = vmatprep.subr.mxu0 0.0
    %1298 = vmatpush1.xpose.msra.mxu0 0.0
    %1299 = vmatprep.subr.mxu0 0.0
    %1300 = vmatpush1.xpose.msra.mxu0 0.0
    %1301 = vmatprep.subr.mxu0 0.0
    %1302 = vmatpush1.xpose.msra.mxu0 0.0
    %1303 = vmatprep.subr.mxu0 0.0
    %1304 = vmatpush1.xpose.msra.mxu0 0.0
    %1305 = vmatprep.subr.mxu0 0.0
    %1306 = vmatpush1.xpose.msra.mxu0 0.0
    %1307 = vmatprep.subr.mxu0 0.0
    %1308 = vmatpush1.xpose.msra.mxu0 %v1275
    %1309 = vmatprep.subr.mxu0 0.0
    %1310 = vmatpush2.xpose.msra.mxu0 0.0
    %1311 = vmatprep.subr.mxu0 0.0
    %1312 = vmatpush2.xpose.msra.mxu0 0.0
    %1313 = vmatprep.subr.mxu0 0.0
    %1314 = vmatpush2.xpose.msra.mxu0 0.0
    %1315 = vmatprep.subr.mxu0 0.0
    %1316 = vmatpush2.xpose.msra.mxu0 0.0
    %1317 = vmatprep.subr.mxu0 0.0
    %1318 = vmatpush2.xpose.msra.mxu0 0.0
    %1319 = vmatprep.subr.mxu0 0.0
    %1320 = vmatpush2.xpose.msra.mxu0 0.0
    %1321 = vmatprep.subr.mxu0 0.0
    %1322 = vmatpush2.xpose.msra.mxu0 0.0
    %1323 = vmatprep.subr.mxu0 0.0
    %1324 = vmatpush2.xpose.msra.mxu0 0.0
    %1325 = vmatprep.subr.mxu0 0.0
    %1326 = vmatpush2.xpose.msra.mxu0 0.0
    %1327 = vmatprep.subr.mxu0 0.0
    %1328 = vmatpush2.xpose.msra.mxu0 0.0
    %1329 = vmatprep.subr.mxu0 0.0
    %1330 = vmatpush2.xpose.msra.mxu0 0.0
    %1331 = vmatprep.subr.mxu0 0.0
    %1332 = vmatpush2.xpose.msra.mxu0 0.0
    %1333 = vmatprep.subr.mxu0 0.0
    %1334 = vmatpush2.xpose.msra.mxu0 0.0
    %1335 = vmatprep.subr.mxu0 0.0
    %1336 = vmatpush2.xpose.msra.mxu0 0.0
    %1337 = vmatprep.subr.mxu0 0.0
    %1338 = vmatpush2.xpose.msra.mxu0 0.0
    %1339 = vmatprep.subr.mxu0 0.0
    %1340 = vmatpush2.xpose.msra.mxu0 0.0
    %1341 = vmatprep.mubr.f32.mxu0 0.0
    %1342 = vmatmul.mubr.f32.gmra.mxu0 %v1272
    %v1343 = vpop.f32.mrf.mxu0
    %v1344 = vadd.f32 0.0, %v1343
    %v1345 = vpop.f32.mrf.mxu0
    %1346 = vdwg.mxu0
    %v1348 = vsel %vm1042, %v446, 0
    %v1351 = vsel %vm1042, %v742, 0
    %1353 = vmatprep.subr.mxu0 0.0
    %1354 = vmatpush1.xpose.msra.mxu0 0.0
    %1355 = vmatprep.subr.mxu0 0.0
    %1356 = vmatpush1.xpose.msra.mxu0 0.0
    %1357 = vmatprep.subr.mxu0 0.0
    %1358 = vmatpush1.xpose.msra.mxu0 0.0
    %1359 = vmatprep.subr.mxu0 0.0
    %1360 = vmatpush1.xpose.msra.mxu0 0.0
    %1361 = vmatprep.subr.mxu0 0.0
    %1362 = vmatpush1.xpose.msra.mxu0 0.0
    %1363 = vmatprep.subr.mxu0 0.0
    %1364 = vmatpush1.xpose.msra.mxu0 0.0
    %1365 = vmatprep.subr.mxu0 0.0
    %1366 = vmatpush1.xpose.msra.mxu0 0.0
    %1367 = vmatprep.subr.mxu0 0.0
    %1368 = vmatpush1.xpose.msra.mxu0 0.0
    %1369 = vmatprep.subr.mxu0 0.0
    %1370 = vmatpush1.xpose.msra.mxu0 0.0
    %1371 = vmatprep.subr.mxu0 0.0
    %1372 = vmatpush1.xpose.msra.mxu0 0.0
    %1373 = vmatprep.subr.mxu0 0.0
    %1374 = vmatpush1.xpose.msra.mxu0 0.0
    %1375 = vmatprep.subr.mxu0 0.0
    %1376 = vmatpush1.xpose.msra.mxu0 0.0
    %1377 = vmatprep.subr.mxu0 0.0
    %1378 = vmatpush1.xpose.msra.mxu0 0.0
    %1379 = vmatprep.subr.mxu0 0.0
    %1380 = vmatpush1.xpose.msra.mxu0 0.0
    %1381 = vmatprep.subr.mxu0 0.0
    %1382 = vmatpush1.xpose.msra.mxu0 0.0
    %1383 = vmatprep.subr.mxu0 0.0
    %1384 = vmatpush1.xpose.msra.mxu0 %v1351
    %1385 = vmatprep.subr.mxu0 0.0
    %1386 = vmatpush2.xpose.msra.mxu0 0.0
    %1387 = vmatprep.subr.mxu0 0.0
    %1388 = vmatpush2.xpose.msra.mxu0 0.0
    %1389 = vmatprep.subr.mxu0 0.0
    %1390 = vmatpush2.xpose.msra.mxu0 0.0
    %1391 = vmatprep.subr.mxu0 0.0
    %1392 = vmatpush2.xpose.msra.mxu0 0.0
    %1393 = vmatprep.subr.mxu0 0.0
    %1394 = vmatpush2.xpose.msra.mxu0 0.0
    %1395 = vmatprep.subr.mxu0 0.0
    %1396 = vmatpush2.xpose.msra.mxu0 0.0
    %1397 = vmatprep.subr.mxu0 0.0
    %1398 = vmatpush2.xpose.msra.mxu0 0.0
    %1399 = vmatprep.subr.mxu0 0.0
    %1400 = vmatpush2.xpose.msra.mxu0 0.0
    %1401 = vmatprep.subr.mxu0 0.0
    %1402 = vmatpush2.xpose.msra.mxu0 0.0
    %1403 = vmatprep.subr.mxu0 0.0
    %1404 = vmatpush2.xpose.msra.mxu0 0.0
    %1405 = vmatprep.subr.mxu0 0.0
    %1406 = vmatpush2.xpose.msra.mxu0 0.0
    %1407 = vmatprep.subr.mxu0 0.0
    %1408 = vmatpush2.xpose.msra.mxu0 0.0
    %1409 = vmatprep.subr.mxu0 0.0
    %1410 = vmatpush2.xpose.msra.mxu0 0.0
    %1411 = vmatprep.subr.mxu0 0.0
    %1412 = vmatpush2.xpose.msra.mxu0 0.0
    %1413 = vmatprep.subr.mxu0 0.0
    %1414 = vmatpush2.xpose.msra.mxu0 0.0
    %1415 = vmatprep.subr.mxu0 0.0
    %1416 = vmatpush2.xpose.msra.mxu0 0.0
    %1417 = vmatprep.mubr.f32.mxu0 0.0
    %1418 = vmatmul.mubr.f32.gmra.mxu0 %v1348
    %v1419 = vpop.f32.mrf.mxu0
    %v1420 = vadd.f32 0.0, %v1419
    %v1421 = vpop.f32.mrf.mxu0
    %1422 = vdwg.mxu0
    %v1424 = vsel %vm1042, %v447, 0
    %v1427 = vsel %vm1042, %v743, 0
    %1429 = vmatprep.subr.mxu0 0.0
    %1430 = vmatpush1.xpose.msra.mxu0 0.0
    %1431 = vmatprep.subr.mxu0 0.0
    %1432 = vmatpush1.xpose.msra.mxu0 0.0
    %1433 = vmatprep.subr.mxu0 0.0
    %1434 = vmatpush1.xpose.msra.mxu0 0.0
    %1435 = vmatprep.subr.mxu0 0.0
    %1436 = vmatpush1.xpose.msra.mxu0 0.0
    %1437 = vmatprep.subr.mxu0 0.0
    %1438 = vmatpush1.xpose.msra.mxu0 0.0
    %1439 = vmatprep.subr.mxu0 0.0
    %1440 = vmatpush1.xpose.msra.mxu0 0.0
    %1441 = vmatprep.subr.mxu0 0.0
    %1442 = vmatpush1.xpose.msra.mxu0 0.0
    %1443 = vmatprep.subr.mxu0 0.0
    %1444 = vmatpush1.xpose.msra.mxu0 0.0
    %1445 = vmatprep.subr.mxu0 0.0
    %1446 = vmatpush1.xpose.msra.mxu0 0.0
    %1447 = vmatprep.subr.mxu0 0.0
    %1448 = vmatpush1.xpose.msra.mxu0 0.0
    %1449 = vmatprep.subr.mxu0 0.0
    %1450 = vmatpush1.xpose.msra.mxu0 0.0
    %1451 = vmatprep.subr.mxu0 0.0
    %1452 = vmatpush1.xpose.msra.mxu0 0.0
    %1453 = vmatprep.subr.mxu0 0.0
    %1454 = vmatpush1.xpose.msra.mxu0 0.0
    %1455 = vmatprep.subr.mxu0 0.0
    %1456 = vmatpush1.xpose.msra.mxu0 0.0
    %1457 = vmatprep.subr.mxu0 0.0
    %1458 = vmatpush1.xpose.msra.mxu0 0.0
    %1459 = vmatprep.subr.mxu0 0.0
    %1460 = vmatpush1.xpose.msra.mxu0 %v1427
    %1461 = vmatprep.subr.mxu0 0.0
    %1462 = vmatpush2.xpose.msra.mxu0 0.0
    %1463 = vmatprep.subr.mxu0 0.0
    %1464 = vmatpush2.xpose.msra.mxu0 0.0
    %1465 = vmatprep.subr.mxu0 0.0
    %1466 = vmatpush2.xpose.msra.mxu0 0.0
    %1467 = vmatprep.subr.mxu0 0.0
    %1468 = vmatpush2.xpose.msra.mxu0 0.0
    %1469 = vmatprep.subr.mxu0 0.0
    %1470 = vmatpush2.xpose.msra.mxu0 0.0
    %1471 = vmatprep.subr.mxu0 0.0
    %1472 = vmatpush2.xpose.msra.mxu0 0.0
    %1473 = vmatprep.subr.mxu0 0.0
    %1474 = vmatpush2.xpose.msra.mxu0 0.0
    %1475 = vmatprep.subr.mxu0 0.0
    %1476 = vmatpush2.xpose.msra.mxu0 0.0
    %1477 = vmatprep.subr.mxu0 0.0
    %1478 = vmatpush2.xpose.msra.mxu0 0.0
    %1479 = vmatprep.subr.mxu0 0.0
    %1480 = vmatpush2.xpose.msra.mxu0 0.0
    %1481 = vmatprep.subr.mxu0 0.0
    %1482 = vmatpush2.xpose.msra.mxu0 0.0
    %1483 = vmatprep.subr.mxu0 0.0
    %1484 = vmatpush2.xpose.msra.mxu0 0.0
    %1485 = vmatprep.subr.mxu0 0.0
    %1486 = vmatpush2.xpose.msra.mxu0 0.0
    %1487 = vmatprep.subr.mxu0 0.0
    %1488 = vmatpush2.xpose.msra.mxu0 0.0
    %1489 = vmatprep.subr.mxu0 0.0
    %1490 = vmatpush2.xpose.msra.mxu0 0.0
    %1491 = vmatprep.subr.mxu0 0.0
    %1492 = vmatpush2.xpose.msra.mxu0 0.0
    %1493 = vmatprep.mubr.f32.mxu0 0.0
    %1494 = vmatmul.mubr.f32.gmra.mxu0 %v1424
    %v1495 = vpop.f32.mrf.mxu0
    %v1496 = vadd.f32 0.0, %v1495
    %v1497 = vpop.f32.mrf.mxu0
    %1498 = vdwg.mxu0
    %v1500 = vsel %vm1042, %v448, 0
    %v1503 = vsel %vm1042, %v744, 0
    %1505 = vmatprep.subr.mxu0 0.0
    %1506 = vmatpush1.xpose.msra.mxu0 0.0
    %1507 = vmatprep.subr.mxu0 0.0
    %1508 = vmatpush1.xpose.msra.mxu0 0.0
    %1509 = vmatprep.subr.mxu0 0.0
    %1510 = vmatpush1.xpose.msra.mxu0 0.0
    %1511 = vmatprep.subr.mxu0 0.0
    %1512 = vmatpush1.xpose.msra.mxu0 0.0
    %1513 = vmatprep.subr.mxu0 0.0
    %1514 = vmatpush1.xpose.msra.mxu0 0.0
    %1515 = vmatprep.subr.mxu0 0.0
    %1516 = vmatpush1.xpose.msra.mxu0 0.0
    %1517 = vmatprep.subr.mxu0 0.0
    %1518 = vmatpush1.xpose.msra.mxu0 0.0
    %1519 = vmatprep.subr.mxu0 0.0
    %1520 = vmatpush1.xpose.msra.mxu0 0.0
    %1521 = vmatprep.subr.mxu0 0.0
    %1522 = vmatpush1.xpose.msra.mxu0 0.0
    %1523 = vmatprep.subr.mxu0 0.0
    %1524 = vmatpush1.xpose.msra.mxu0 0.0
    %1525 = vmatprep.subr.mxu0 0.0
    %1526 = vmatpush1.xpose.msra.mxu0 0.0
    %1527 = vmatprep.subr.mxu0 0.0
    %1528 = vmatpush1.xpose.msra.mxu0 0.0
    %1529 = vmatprep.subr.mxu0 0.0
    %1530 = vmatpush1.xpose.msra.mxu0 0.0
    %1531 = vmatprep.subr.mxu0 0.0
    %1532 = vmatpush1.xpose.msra.mxu0 0.0
    %1533 = vmatprep.subr.mxu0 0.0
    %1534 = vmatpush1.xpose.msra.mxu0 0.0
    %1535 = vmatprep.subr.mxu0 0.0
    %1536 = vmatpush1.xpose.msra.mxu0 %v1503
    %1537 = vmatprep.subr.mxu0 0.0
    %1538 = vmatpush2.xpose.msra.mxu0 0.0
    %1539 = vmatprep.subr.mxu0 0.0
    %1540 = vmatpush2.xpose.msra.mxu0 0.0
    %1541 = vmatprep.subr.mxu0 0.0
    %1542 = vmatpush2.xpose.msra.mxu0 0.0
    %1543 = vmatprep.subr.mxu0 0.0
    %1544 = vmatpush2.xpose.msra.mxu0 0.0
    %1545 = vmatprep.subr.mxu0 0.0
    %1546 = vmatpush2.xpose.msra.mxu0 0.0
    %1547 = vmatprep.subr.mxu0 0.0
    %1548 = vmatpush2.xpose.msra.mxu0 0.0
    %1549 = vmatprep.subr.mxu0 0.0
    %1550 = vmatpush2.xpose.msra.mxu0 0.0
    %1551 = vmatprep.subr.mxu0 0.0
    %1552 = vmatpush2.xpose.msra.mxu0 0.0
    %1553 = vmatprep.subr.mxu0 0.0
    %1554 = vmatpush2.xpose.msra.mxu0 0.0
    %1555 = vmatprep.subr.mxu0 0.0
    %1556 = vmatpush2.xpose.msra.mxu0 0.0
    %1557 = vmatprep.subr.mxu0 0.0
    %1558 = vmatpush2.xpose.msra.mxu0 0.0
    %1559 = vmatprep.subr.mxu0 0.0
    %1560 = vmatpush2.xpose.msra.mxu0 0.0
    %1561 = vmatprep.subr.mxu0 0.0
    %1562 = vmatpush2.xpose.msra.mxu0 0.0
    %1563 = vmatprep.subr.mxu0 0.0
    %1564 = vmatpush2.xpose.msra.mxu0 0.0
    %1565 = vmatprep.subr.mxu0 0.0
    %1566 = vmatpush2.xpose.msra.mxu0 0.0
    %1567 = vmatprep.subr.mxu0 0.0
    %1568 = vmatpush2.xpose.msra.mxu0 0.0
    %1569 = vmatprep.mubr.f32.mxu0 0.0
    %1570 = vmatmul.mubr.f32.gmra.mxu0 %v1500
    %v1571 = vpop.f32.mrf.mxu0
    %v1572 = vadd.f32 0.0, %v1571
    %v1573 = vpop.f32.mrf.mxu0
    %1574 = vdwg.mxu0
    %v1576 = vsel %vm1042, %v449, 0
    %v1579 = vsel %vm1042, %v745, 0
    %1581 = vmatprep.subr.mxu0 0.0
    %1582 = vmatpush1.xpose.msra.mxu0 0.0
    %1583 = vmatprep.subr.mxu0 0.0
    %1584 = vmatpush1.xpose.msra.mxu0 0.0
    %1585 = vmatprep.subr.mxu0 0.0
    %1586 = vmatpush1.xpose.msra.mxu0 0.0
    %1587 = vmatprep.subr.mxu0 0.0
    %1588 = vmatpush1.xpose.msra.mxu0 0.0
    %1589 = vmatprep.subr.mxu0 0.0
    %1590 = vmatpush1.xpose.msra.mxu0 0.0
    %1591 = vmatprep.subr.mxu0 0.0
    %1592 = vmatpush1.xpose.msra.mxu0 0.0
    %1593 = vmatprep.subr.mxu0 0.0
    %1594 = vmatpush1.xpose.msra.mxu0 0.0
    %1595 = vmatprep.subr.mxu0 0.0
    %1596 = vmatpush1.xpose.msra.mxu0 0.0
    %1597 = vmatprep.subr.mxu0 0.0
    %1598 = vmatpush1.xpose.msra.mxu0 0.0
    %1599 = vmatprep.subr.mxu0 0.0
    %1600 = vmatpush1.xpose.msra.mxu0 0.0
    %1601 = vmatprep.subr.mxu0 0.0
    %1602 = vmatpush1.xpose.msra.mxu0 0.0
    %1603 = vmatprep.subr.mxu0 0.0
    %1604 = vmatpush1.xpose.msra.mxu0 0.0
    %1605 = vmatprep.subr.mxu0 0.0
    %1606 = vmatpush1.xpose.msra.mxu0 0.0
    %1607 = vmatprep.subr.mxu0 0.0
    %1608 = vmatpush1.xpose.msra.mxu0 0.0
    %1609 = vmatprep.subr.mxu0 0.0
    %1610 = vmatpush1.xpose.msra.mxu0 0.0
    %1611 = vmatprep.subr.mxu0 0.0
    %1612 = vmatpush1.xpose.msra.mxu0 %v1579
    %1613 = vmatprep.subr.mxu0 0.0
    %1614 = vmatpush2.xpose.msra.mxu0 0.0
    %1615 = vmatprep.subr.mxu0 0.0
    %1616 = vmatpush2.xpose.msra.mxu0 0.0
    %1617 = vmatprep.subr.mxu0 0.0
    %1618 = vmatpush2.xpose.msra.mxu0 0.0
    %1619 = vmatprep.subr.mxu0 0.0
    %1620 = vmatpush2.xpose.msra.mxu0 0.0
    %1621 = vmatprep.subr.mxu0 0.0
    %1622 = vmatpush2.xpose.msra.mxu0 0.0
    %1623 = vmatprep.subr.mxu0 0.0
    %1624 = vmatpush2.xpose.msra.mxu0 0.0
    %1625 = vmatprep.subr.mxu0 0.0
    %1626 = vmatpush2.xpose.msra.mxu0 0.0
    %1627 = vmatprep.subr.mxu0 0.0
    %1628 = vmatpush2.xpose.msra.mxu0 0.0
    %1629 = vmatprep.subr.mxu0 0.0
    %1630 = vmatpush2.xpose.msra.mxu0 0.0
    %1631 = vmatprep.subr.mxu0 0.0
    %1632 = vmatpush2.xpose.msra.mxu0 0.0
    %1633 = vmatprep.subr.mxu0 0.0
    %1634 = vmatpush2.xpose.msra.mxu0 0.0
    %1635 = vmatprep.subr.mxu0 0.0
    %1636 = vmatpush2.xpose.msra.mxu0 0.0
    %1637 = vmatprep.subr.mxu0 0.0
    %1638 = vmatpush2.xpose.msra.mxu0 0.0
    %1639 = vmatprep.subr.mxu0 0.0
    %1640 = vmatpush2.xpose.msra.mxu0 0.0
    %1641 = vmatprep.subr.mxu0 0.0
    %1642 = vmatpush2.xpose.msra.mxu0 0.0
    %1643 = vmatprep.subr.mxu0 0.0
    %1644 = vmatpush2.xpose.msra.mxu0 0.0
    %1645 = vmatprep.mubr.f32.mxu0 0.0
    %1646 = vmatmul.mubr.f32.gmra.mxu0 %v1576
    %v1647 = vpop.f32.mrf.mxu0
    %v1648 = vadd.f32 0.0, %v1647
    %v1649 = vpop.f32.mrf.mxu0
    %1650 = vdwg.mxu0
    %v1651 = vsel %vm1042, %v1116, -inf
    %1652 = vmax.xlane.f32.xlu0 %v1651
    %v1653 = vpop.xlane.xlu0 %1652
    %v1654 = vsel %vm1042, %v1192, -inf
    %1655 = vmax.xlane.f32.xlu0 %v1654
    %v1656 = vpop.xlane.xlu0 %1655
    %v1657 = vsel %vm1042, %v1268, -inf
    %1658 = vmax.xlane.f32.xlu0 %v1657
    %v1659 = vpop.xlane.xlu0 %1658
    %v1660 = vsel %vm1042, %v1344, -inf
    %1661 = vmax.xlane.f32.xlu0 %v1660
    %v1662 = vpop.xlane.xlu0 %1661
    %v1663 = vsel %vm1042, %v1420, -inf
    %1664 = vmax.xlane.f32.xlu0 %v1663
    %v1665 = vpop.xlane.xlu0 %1664
    %v1666 = vsel %vm1042, %v1496, -inf
    %1667 = vmax.xlane.f32.xlu0 %v1666
    %v1668 = vpop.xlane.xlu0 %1667
    %v1669 = vsel %vm1042, %v1572, -inf
    %1670 = vmax.xlane.f32.xlu0 %v1669
    %v1671 = vpop.xlane.xlu0 %1670
    %v1672 = vsel %vm1042, %v1648, -inf
    %1673 = vmax.xlane.f32.xlu0 %v1672
    %v1674 = vpop.xlane.xlu0 %1673
    %v1675 = vsub.f32 %v1116, %v1653
    %v1676 = vsub.f32 %v1192, %v1656
    %v1677 = vsub.f32 %v1268, %v1659
    %v1678 = vsub.f32 %v1344, %v1662
    %v1679 = vsub.f32 %v1420, %v1665
    %v1680 = vsub.f32 %v1496, %v1668
    %v1681 = vsub.f32 %v1572, %v1671
    %v1682 = vsub.f32 %v1648, %v1674
    %v1683 = vmul.f32 %v1675, 1.442695
    %v1684 = vpow.pop %v1683
    %v1685 = vmul.f32 %v1676, 1.442695
    %v1686 = vpow.pop %v1685
    %v1687 = vmul.f32 %v1677, 1.442695
    %v1688 = vpow.pop %v1687
    %v1689 = vmul.f32 %v1678, 1.442695
    %v1690 = vpow.pop %v1689
    %v1691 = vmul.f32 %v1679, 1.442695
    %v1692 = vpow.pop %v1691
    %v1693 = vmul.f32 %v1680, 1.442695
    %v1694 = vpow.pop %v1693
    %v1695 = vmul.f32 %v1681, 1.442695
    %v1696 = vpow.pop %v1695
    %v1697 = vmul.f32 %v1682, 1.442695
    %v1698 = vpow.pop %v1697
    %v1699 = vsel %vm1042, %v1684, 0.0
    %1700 = vadd.xlane.f32.xlu0 %v1699
    %v1701 = vpop.xlane.xlu0 %1700
    %v1702 = vsel %vm1042, %v1686, 0.0
    %1703 = vadd.xlane.f32.xlu0 %v1702
    %v1704 = vpop.xlane.xlu0 %1703
    %v1705 = vsel %vm1042, %v1688, 0.0
    %1706 = vadd.xlane.f32.xlu0 %v1705
    %v1707 = vpop.xlane.xlu0 %1706
    %v1708 = vsel %vm1042, %v1690, 0.0
    %1709 = vadd.xlane.f32.xlu0 %v1708
    %v1710 = vpop.xlane.xlu0 %1709
    %v1711 = vsel %vm1042, %v1692, 0.0
    %1712 = vadd.xlane.f32.xlu0 %v1711
    %v1713 = vpop.xlane.xlu0 %1712
    %v1714 = vsel %vm1042, %v1694, 0.0
    %1715 = vadd.xlane.f32.xlu0 %v1714
    %v1716 = vpop.xlane.xlu0 %1715
    %v1717 = vsel %vm1042, %v1696, 0.0
    %1718 = vadd.xlane.f32.xlu0 %v1717
    %v1719 = vpop.xlane.xlu0 %1718
    %v1720 = vsel %vm1042, %v1698, 0.0
    %1721 = vadd.xlane.f32.xlu0 %v1720
    %v1722 = vpop.xlane.xlu0 %1721
    %v1723 = vrcp.pop %v1701
    %v1724 = vrcp.pop %v1704
    %v1725 = vrcp.pop %v1707
    %v1726 = vrcp.pop %v1710
    %v1727 = vrcp.pop %v1713
    %v1728 = vrcp.pop %v1716
    %v1729 = vrcp.pop %v1719
    %v1730 = vrcp.pop %v1722
    %v1731 = vmul.f32 %v1684, %v1723
    %v1732 = vmul.f32 %v1686, %v1724
    %v1733 = vmul.f32 %v1688, %v1725
    %v1734 = vmul.f32 %v1690, %v1726
    %v1735 = vmul.f32 %v1692, %v1727
    %v1736 = vmul.f32 %v1694, %v1728
    %v1737 = vmul.f32 %v1696, %v1729
    %v1738 = vmul.f32 %v1698, %v1730
    %v1740 = vsel %vm1042, %v1731, 0
    %1742 = vmatprep.subr.mxu0 0.0
    %1743 = vmatpush1.msra.mxu0 0.0
    %1744 = vmatprep.subr.mxu0 0.0
    %1745 = vmatpush1.msra.mxu0 0.0
    %1746 = vmatprep.subr.mxu0 0.0
    %1747 = vmatpush1.msra.mxu0 0.0
    %1748 = vmatprep.subr.mxu0 0.0
    %1749 = vmatpush1.msra.mxu0 0.0
    %1750 = vmatprep.subr.mxu0 0.0
    %1751 = vmatpush1.msra.mxu0 0.0
    %1752 = vmatprep.subr.mxu0 0.0
    %1753 = vmatpush1.msra.mxu0 0.0
    %1754 = vmatprep.subr.mxu0 0.0
    %1755 = vmatpush1.msra.mxu0 0.0
    %1756 = vmatprep.subr.mxu0 0.0
    %1757 = vmatpush1.msra.mxu0 0.0
    %1758 = vmatprep.subr.mxu0 0.0
    %1759 = vmatpush1.msra.mxu0 0.0
    %1760 = vmatprep.subr.mxu0 0.0
    %1761 = vmatpush1.msra.mxu0 0.0
    %1762 = vmatprep.subr.mxu0 0.0
    %1763 = vmatpush1.msra.mxu0 0.0
    %1764 = vmatprep.subr.mxu0 0.0
    %1765 = vmatpush1.msra.mxu0 0.0
    %1766 = vmatprep.subr.mxu0 0.0
    %1767 = vmatpush1.msra.mxu0 0.0
    %1768 = vmatprep.subr.mxu0 0.0
    %1769 = vmatpush1.msra.mxu0 0.0
    %1770 = vmatprep.subr.mxu0 0.0
    %1771 = vmatpush1.msra.mxu0 0.0
    %1772 = vmatprep.subr.mxu0 0.0
    %1773 = vmatpush1.msra.mxu0 %v970
    %1774 = vmatprep.subr.mxu0 0.0
    %1775 = vmatpush2.msra.mxu0 0.0
    %1776 = vmatprep.subr.mxu0 0.0
    %1777 = vmatpush2.msra.mxu0 0.0
    %1778 = vmatprep.subr.mxu0 0.0
    %1779 = vmatpush2.msra.mxu0 0.0
    %1780 = vmatprep.subr.mxu0 0.0
    %1781 = vmatpush2.msra.mxu0 0.0
    %1782 = vmatprep.subr.mxu0 0.0
    %1783 = vmatpush2.msra.mxu0 0.0
    %1784 = vmatprep.subr.mxu0 0.0
    %1785 = vmatpush2.msra.mxu0 0.0
    %1786 = vmatprep.subr.mxu0 0.0
    %1787 = vmatpush2.msra.mxu0 0.0
    %1788 = vmatprep.subr.mxu0 0.0
    %1789 = vmatpush2.msra.mxu0 0.0
    %1790 = vmatprep.subr.mxu0 0.0
    %1791 = vmatpush2.msra.mxu0 0.0
    %1792 = vmatprep.subr.mxu0 0.0
    %1793 = vmatpush2.msra.mxu0 0.0
    %1794 = vmatprep.subr.mxu0 0.0
    %1795 = vmatpush2.msra.mxu0 0.0
    %1796 = vmatprep.subr.mxu0 0.0
    %1797 = vmatpush2.msra.mxu0 0.0
    %1798 = vmatprep.subr.mxu0 0.0
    %1799 = vmatpush2.msra.mxu0 0.0
    %1800 = vmatprep.subr.mxu0 0.0
    %1801 = vmatpush2.msra.mxu0 0.0
    %1802 = vmatprep.subr.mxu0 0.0
    %1803 = vmatpush2.msra.mxu0 0.0
    %1804 = vmatprep.subr.mxu0 0.0
    %1805 = vmatpush2.msra.mxu0 0.0
    %1806 = vmatprep.mubr.f32.mxu0 0.0
    %1807 = vmatmul.mubr.f32.gmra.mxu0 %v1740
    %v1808 = vpop.f32.mrf.mxu0
    %v1809 = vadd.f32 0.0, %v1808
    %v1810 = vpop.f32.mrf.mxu0
    %1811 = vdwg.mxu0
    %v1813 = vsel %vm1042, %v1732, 0
    %1815 = vmatprep.subr.mxu0 0.0
    %1816 = vmatpush1.msra.mxu0 0.0
    %1817 = vmatprep.subr.mxu0 0.0
    %1818 = vmatpush1.msra.mxu0 0.0
    %1819 = vmatprep.subr.mxu0 0.0
    %1820 = vmatpush1.msra.mxu0 0.0
    %1821 = vmatprep.subr.mxu0 0.0
    %1822 = vmatpush1.msra.mxu0 0.0
    %1823 = vmatprep.subr.mxu0 0.0
    %1824 = vmatpush1.msra.mxu0 0.0
    %1825 = vmatprep.subr.mxu0 0.0
    %1826 = vmatpush1.msra.mxu0 0.0
    %1827 = vmatprep.subr.mxu0 0.0
    %1828 = vmatpush1.msra.mxu0 0.0
    %1829 = vmatprep.subr.mxu0 0.0
    %1830 = vmatpush1.msra.mxu0 0.0
    %1831 = vmatprep.subr.mxu0 0.0
    %1832 = vmatpush1.msra.mxu0 0.0
    %1833 = vmatprep.subr.mxu0 0.0
    %1834 = vmatpush1.msra.mxu0 0.0
    %1835 = vmatprep.subr.mxu0 0.0
    %1836 = vmatpush1.msra.mxu0 0.0
    %1837 = vmatprep.subr.mxu0 0.0
    %1838 = vmatpush1.msra.mxu0 0.0
    %1839 = vmatprep.subr.mxu0 0.0
    %1840 = vmatpush1.msra.mxu0 0.0
    %1841 = vmatprep.subr.mxu0 0.0
    %1842 = vmatpush1.msra.mxu0 0.0
    %1843 = vmatprep.subr.mxu0 0.0
    %1844 = vmatpush1.msra.mxu0 0.0
    %1845 = vmatprep.subr.mxu0 0.0
    %1846 = vmatpush1.msra.mxu0 %v971
    %1847 = vmatprep.subr.mxu0 0.0
    %1848 = vmatpush2.msra.mxu0 0.0
    %1849 = vmatprep.subr.mxu0 0.0
    %1850 = vmatpush2.msra.mxu0 0.0
    %1851 = vmatprep.subr.mxu0 0.0
    %1852 = vmatpush2.msra.mxu0 0.0
    %1853 = vmatprep.subr.mxu0 0.0
    %1854 = vmatpush2.msra.mxu0 0.0
    %1855 = vmatprep.subr.mxu0 0.0
    %1856 = vmatpush2.msra.mxu0 0.0
    %1857 = vmatprep.subr.mxu0 0.0
    %1858 = vmatpush2.msra.mxu0 0.0
    %1859 = vmatprep.subr.mxu0 0.0
    %1860 = vmatpush2.msra.mxu0 0.0
    %1861 = vmatprep.subr.mxu0 0.0
    %1862 = vmatpush2.msra.mxu0 0.0
    %1863 = vmatprep.subr.mxu0 0.0
    %1864 = vmatpush2.msra.mxu0 0.0
    %1865 = vmatprep.subr.mxu0 0.0
    %1866 = vmatpush2.msra.mxu0 0.0
    %1867 = vmatprep.subr.mxu0 0.0
    %1868 = vmatpush2.msra.mxu0 0.0
    %1869 = vmatprep.subr.mxu0 0.0
    %1870 = vmatpush2.msra.mxu0 0.0
    %1871 = vmatprep.subr.mxu0 0.0
    %1872 = vmatpush2.msra.mxu0 0.0
    %1873 = vmatprep.subr.mxu0 0.0
    %1874 = vmatpush2.msra.mxu0 0.0
    %1875 = vmatprep.subr.mxu0 0.0
    %1876 = vmatpush2.msra.mxu0 0.0
    %1877 = vmatprep.subr.mxu0 0.0
    %1878 = vmatpush2.msra.mxu0 0.0
    %1879 = vmatprep.mubr.f32.mxu0 0.0
    %1880 = vmatmul.mubr.f32.gmra.mxu0 %v1813
    %v1881 = vpop.f32.mrf.mxu0
    %v1882 = vadd.f32 0.0, %v1881
    %v1883 = vpop.f32.mrf.mxu0
    %1884 = vdwg.mxu0
    %v1886 = vsel %vm1042, %v1733, 0
    %1888 = vmatprep.subr.mxu0 0.0
    %1889 = vmatpush1.msra.mxu0 0.0
    %1890 = vmatprep.subr.mxu0 0.0
    %1891 = vmatpush1.msra.mxu0 0.0
    %1892 = vmatprep.subr.mxu0 0.0
    %1893 = vmatpush1.msra.mxu0 0.0
    %1894 = vmatprep.subr.mxu0 0.0
    %1895 = vmatpush1.msra.mxu0 0.0
    %1896 = vmatprep.subr.mxu0 0.0
    %1897 = vmatpush1.msra.mxu0 0.0
    %1898 = vmatprep.subr.mxu0 0.0
    %1899 = vmatpush1.msra.mxu0 0.0
    %1900 = vmatprep.subr.mxu0 0.0
    %1901 = vmatpush1.msra.mxu0 0.0
    %1902 = vmatprep.subr.mxu0 0.0
    %1903 = vmatpush1.msra.mxu0 0.0
    %1904 = vmatprep.subr.mxu0 0.0
    %1905 = vmatpush1.msra.mxu0 0.0
    %1906 = vmatprep.subr.mxu0 0.0
    %1907 = vmatpush1.msra.mxu0 0.0
    %1908 = vmatprep.subr.mxu0 0.0
    %1909 = vmatpush1.msra.mxu0 0.0
    %1910 = vmatprep.subr.mxu0 0.0
    %1911 = vmatpush1.msra.mxu0 0.0
    %1912 = vmatprep.subr.mxu0 0.0
    %1913 = vmatpush1.msra.mxu0 0.0
    %1914 = vmatprep.subr.mxu0 0.0
    %1915 = vmatpush1.msra.mxu0 0.0
    %1916 = vmatprep.subr.mxu0 0.0
    %1917 = vmatpush1.msra.mxu0 0.0
    %1918 = vmatprep.subr.mxu0 0.0
    %1919 = vmatpush1.msra.mxu0 %v972
    %1920 = vmatprep.subr.mxu0 0.0
    %1921 = vmatpush2.msra.mxu0 0.0
    %1922 = vmatprep.subr.mxu0 0.0
    %1923 = vmatpush2.msra.mxu0 0.0
    %1924 = vmatprep.subr.mxu0 0.0
    %1925 = vmatpush2.msra.mxu0 0.0
    %1926 = vmatprep.subr.mxu0 0.0
    %1927 = vmatpush2.msra.mxu0 0.0
    %1928 = vmatprep.subr.mxu0 0.0
    %1929 = vmatpush2.msra.mxu0 0.0
    %1930 = vmatprep.subr.mxu0 0.0
    %1931 = vmatpush2.msra.mxu0 0.0
    %1932 = vmatprep.subr.mxu0 0.0
    %1933 = vmatpush2.msra.mxu0 0.0
    %1934 = vmatprep.subr.mxu0 0.0
    %1935 = vmatpush2.msra.mxu0 0.0
    %1936 = vmatprep.subr.mxu0 0.0
    %1937 = vmatpush2.msra.mxu0 0.0
    %1938 = vmatprep.subr.mxu0 0.0
    %1939 = vmatpush2.msra.mxu0 0.0
    %1940 = vmatprep.subr.mxu0 0.0
    %1941 = vmatpush2.msra.mxu0 0.0
    %1942 = vmatprep.subr.mxu0 0.0
    %1943 = vmatpush2.msra.mxu0 0.0
    %1944 = vmatprep.subr.mxu0 0.0
    %1945 = vmatpush2.msra.mxu0 0.0
    %1946 = vmatprep.subr.mxu0 0.0
    %1947 = vmatpush2.msra.mxu0 0.0
    %1948 = vmatprep.subr.mxu0 0.0
    %1949 = vmatpush2.msra.mxu0 0.0
    %1950 = vmatprep.subr.mxu0 0.0
    %1951 = vmatpush2.msra.mxu0 0.0
    %1952 = vmatprep.mubr.f32.mxu0 0.0
    %1953 = vmatmul.mubr.f32.gmra.mxu0 %v1886
    %v1954 = vpop.f32.mrf.mxu0
    %v1955 = vadd.f32 0.0, %v1954
    %v1956 = vpop.f32.mrf.mxu0
    %1957 = vdwg.mxu0
    %v1959 = vsel %vm1042, %v1734, 0
    %1961 = vmatprep.subr.mxu0 0.0
    %1962 = vmatpush1.msra.mxu0 0.0
    %1963 = vmatprep.subr.mxu0 0.0
    %1964 = vmatpush1.msra.mxu0 0.0
    %1965 = vmatprep.subr.mxu0 0.0
    %1966 = vmatpush1.msra.mxu0 0.0
    %1967 = vmatprep.subr.mxu0 0.0
    %1968 = vmatpush1.msra.mxu0 0.0
    %1969 = vmatprep.subr.mxu0 0.0
    %1970 = vmatpush1.msra.mxu0 0.0
    %1971 = vmatprep.subr.mxu0 0.0
    %1972 = vmatpush1.msra.mxu0 0.0
    %1973 = vmatprep.subr.mxu0 0.0
    %1974 = vmatpush1.msra.mxu0 0.0
    %1975 = vmatprep.subr.mxu0 0.0
    %1976 = vmatpush1.msra.mxu0 0.0
    %1977 = vmatprep.subr.mxu0 0.0
    %1978 = vmatpush1.msra.mxu0 0.0
    %1979 = vmatprep.subr.mxu0 0.0
    %1980 = vmatpush1.msra.mxu0 0.0
    %1981 = vmatprep.subr.mxu0 0.0
    %1982 = vmatpush1.msra.mxu0 0.0
    %1983 = vmatprep.subr.mxu0 0.0
    %1984 = vmatpush1.msra.mxu0 0.0
    %1985 = vmatprep.subr.mxu0 0.0
    %1986 = vmatpush1.msra.mxu0 0.0
    %1987 = vmatprep.subr.mxu0 0.0
    %1988 = vmatpush1.msra.mxu0 0.0
    %1989 = vmatprep.subr.mxu0 0.0
    %1990 = vmatpush1.msra.mxu0 0.0
    %1991 = vmatprep.subr.mxu0 0.0
    %1992 = vmatpush1.msra.mxu0 %v973
    %1993 = vmatprep.subr.mxu0 0.0
    %1994 = vmatpush2.msra.mxu0 0.0
    %1995 = vmatprep.subr.mxu0 0.0
    %1996 = vmatpush2.msra.mxu0 0.0
    %1997 = vmatprep.subr.mxu0 0.0
    %1998 = vmatpush2.msra.mxu0 0.0
    %1999 = vmatprep.subr.mxu0 0.0
    %2000 = vmatpush2.msra.mxu0 0.0
    %2001 = vmatprep.subr.mxu0 0.0
    %2002 = vmatpush2.msra.mxu0 0.0
    %2003 = vmatprep.subr.mxu0 0.0
    %2004 = vmatpush2.msra.mxu0 0.0
    %2005 = vmatprep.subr.mxu0 0.0
    %2006 = vmatpush2.msra.mxu0 0.0
    %2007 = vmatprep.subr.mxu0 0.0
    %2008 = vmatpush2.msra.mxu0 0.0
    %2009 = vmatprep.subr.mxu0 0.0
    %2010 = vmatpush2.msra.mxu0 0.0
    %2011 = vmatprep.subr.mxu0 0.0
    %2012 = vmatpush2.msra.mxu0 0.0
    %2013 = vmatprep.subr.mxu0 0.0
    %2014 = vmatpush2.msra.mxu0 0.0
    %2015 = vmatprep.subr.mxu0 0.0
    %2016 = vmatpush2.msra.mxu0 0.0
    %2017 = vmatprep.subr.mxu0 0.0
    %2018 = vmatpush2.msra.mxu0 0.0
    %2019 = vmatprep.subr.mxu0 0.0
    %2020 = vmatpush2.msra.mxu0 0.0
    %2021 = vmatprep.subr.mxu0 0.0
    %2022 = vmatpush2.msra.mxu0 0.0
    %2023 = vmatprep.subr.mxu0 0.0
    %2024 = vmatpush2.msra.mxu0 0.0
    %2025 = vmatprep.mubr.f32.mxu0 0.0
    %2026 = vmatmul.mubr.f32.gmra.mxu0 %v1959
    %v2027 = vpop.f32.mrf.mxu0
    %v2028 = vadd.f32 0.0, %v2027
    %v2029 = vpop.f32.mrf.mxu0
    %2030 = vdwg.mxu0
    %v2032 = vsel %vm1042, %v1735, 0
    %2034 = vmatprep.subr.mxu0 0.0
    %2035 = vmatpush1.msra.mxu0 0.0
    %2036 = vmatprep.subr.mxu0 0.0
    %2037 = vmatpush1.msra.mxu0 0.0
    %2038 = vmatprep.subr.mxu0 0.0
    %2039 = vmatpush1.msra.mxu0 0.0
    %2040 = vmatprep.subr.mxu0 0.0
    %2041 = vmatpush1.msra.mxu0 0.0
    %2042 = vmatprep.subr.mxu0 0.0
    %2043 = vmatpush1.msra.mxu0 0.0
    %2044 = vmatprep.subr.mxu0 0.0
    %2045 = vmatpush1.msra.mxu0 0.0
    %2046 = vmatprep.subr.mxu0 0.0
    %2047 = vmatpush1.msra.mxu0 0.0
    %2048 = vmatprep.subr.mxu0 0.0
    %2049 = vmatpush1.msra.mxu0 0.0
    %2050 = vmatprep.subr.mxu0 0.0
    %2051 = vmatpush1.msra.mxu0 0.0
    %2052 = vmatprep.subr.mxu0 0.0
    %2053 = vmatpush1.msra.mxu0 0.0
    %2054 = vmatprep.subr.mxu0 0.0
    %2055 = vmatpush1.msra.mxu0 0.0
    %2056 = vmatprep.subr.mxu0 0.0
    %2057 = vmatpush1.msra.mxu0 0.0
    %2058 = vmatprep.subr.mxu0 0.0
    %2059 = vmatpush1.msra.mxu0 0.0
    %2060 = vmatprep.subr.mxu0 0.0
    %2061 = vmatpush1.msra.mxu0 0.0
    %2062 = vmatprep.subr.mxu0 0.0
    %2063 = vmatpush1.msra.mxu0 0.0
    %2064 = vmatprep.subr.mxu0 0.0
    %2065 = vmatpush1.msra.mxu0 %v1038
    %2066 = vmatprep.subr.mxu0 0.0
    %2067 = vmatpush2.msra.mxu0 0.0
    %2068 = vmatprep.subr.mxu0 0.0
    %2069 = vmatpush2.msra.mxu0 0.0
    %2070 = vmatprep.subr.mxu0 0.0
    %2071 = vmatpush2.msra.mxu0 0.0
    %2072 = vmatprep.subr.mxu0 0.0
    %2073 = vmatpush2.msra.mxu0 0.0
    %2074 = vmatprep.subr.mxu0 0.0
    %2075 = vmatpush2.msra.mxu0 0.0
    %2076 = vmatprep.subr.mxu0 0.0
    %2077 = vmatpush2.msra.mxu0 0.0
    %2078 = vmatprep.subr.mxu0 0.0
    %2079 = vmatpush2.msra.mxu0 0.0
    %2080 = vmatprep.subr.mxu0 0.0
    %2081 = vmatpush2.msra.mxu0 0.0
    %2082 = vmatprep.subr.mxu0 0.0
    %2083 = vmatpush2.msra.mxu0 0.0
    %2084 = vmatprep.subr.mxu0 0.0
    %2085 = vmatpush2.msra.mxu0 0.0
    %2086 = vmatprep.subr.mxu0 0.0
    %2087 = vmatpush2.msra.mxu0 0.0
    %2088 = vmatprep.subr.mxu0 0.0
    %2089 = vmatpush2.msra.mxu0 0.0
    %2090 = vmatprep.subr.mxu0 0.0
    %2091 = vmatpush2.msra.mxu0 0.0
    %2092 = vmatprep.subr.mxu0 0.0
    %2093 = vmatpush2.msra.mxu0 0.0
    %2094 = vmatprep.subr.mxu0 0.0
    %2095 = vmatpush2.msra.mxu0 0.0
    %2096 = vmatprep.subr.mxu0 0.0
    %2097 = vmatpush2.msra.mxu0 0.0
    %2098 = vmatprep.mubr.f32.mxu0 0.0
    %2099 = vmatmul.mubr.f32.gmra.mxu0 %v2032
    %v2100 = vpop.f32.mrf.mxu0
    %v2101 = vadd.f32 0.0, %v2100
    %v2102 = vpop.f32.mrf.mxu0
    %2103 = vdwg.mxu0
    %v2105 = vsel %vm1042, %v1736, 0
    %2107 = vmatprep.subr.mxu0 0.0
    %2108 = vmatpush1.msra.mxu0 0.0
    %2109 = vmatprep.subr.mxu0 0.0
    %2110 = vmatpush1.msra.mxu0 0.0
    %2111 = vmatprep.subr.mxu0 0.0
    %2112 = vmatpush1.msra.mxu0 0.0
    %2113 = vmatprep.subr.mxu0 0.0
    %2114 = vmatpush1.msra.mxu0 0.0
    %2115 = vmatprep.subr.mxu0 0.0
    %2116 = vmatpush1.msra.mxu0 0.0
    %2117 = vmatprep.subr.mxu0 0.0
    %2118 = vmatpush1.msra.mxu0 0.0
    %2119 = vmatprep.subr.mxu0 0.0
    %2120 = vmatpush1.msra.mxu0 0.0
    %2121 = vmatprep.subr.mxu0 0.0
    %2122 = vmatpush1.msra.mxu0 0.0
    %2123 = vmatprep.subr.mxu0 0.0
    %2124 = vmatpush1.msra.mxu0 0.0
    %2125 = vmatprep.subr.mxu0 0.0
    %2126 = vmatpush1.msra.mxu0 0.0
    %2127 = vmatprep.subr.mxu0 0.0
    %2128 = vmatpush1.msra.mxu0 0.0
    %2129 = vmatprep.subr.mxu0 0.0
    %2130 = vmatpush1.msra.mxu0 0.0
    %2131 = vmatprep.subr.mxu0 0.0
    %2132 = vmatpush1.msra.mxu0 0.0
    %2133 = vmatprep.subr.mxu0 0.0
    %2134 = vmatpush1.msra.mxu0 0.0
    %2135 = vmatprep.subr.mxu0 0.0
    %2136 = vmatpush1.msra.mxu0 0.0
    %2137 = vmatprep.subr.mxu0 0.0
    %2138 = vmatpush1.msra.mxu0 %v1039
    %2139 = vmatprep.subr.mxu0 0.0
    %2140 = vmatpush2.msra.mxu0 0.0
    %2141 = vmatprep.subr.mxu0 0.0
    %2142 = vmatpush2.msra.mxu0 0.0
    %2143 = vmatprep.subr.mxu0 0.0
    %2144 = vmatpush2.msra.mxu0 0.0
    %2145 = vmatprep.subr.mxu0 0.0
    %2146 = vmatpush2.msra.mxu0 0.0
    %2147 = vmatprep.subr.mxu0 0.0
    %2148 = vmatpush2.msra.mxu0 0.0
    %2149 = vmatprep.subr.mxu0 0.0
    %2150 = vmatpush2.msra.mxu0 0.0
    %2151 = vmatprep.subr.mxu0 0.0
    %2152 = vmatpush2.msra.mxu0 0.0
    %2153 = vmatprep.subr.mxu0 0.0
    %2154 = vmatpush2.msra.mxu0 0.0
    %2155 = vmatprep.subr.mxu0 0.0
    %2156 = vmatpush2.msra.mxu0 0.0
    %2157 = vmatprep.subr.mxu0 0.0
    %2158 = vmatpush2.msra.mxu0 0.0
    %2159 = vmatprep.subr.mxu0 0.0
    %2160 = vmatpush2.msra.mxu0 0.0
    %2161 = vmatprep.subr.mxu0 0.0
    %2162 = vmatpush2.msra.mxu0 0.0
    %2163 = vmatprep.subr.mxu0 0.0
    %2164 = vmatpush2.msra.mxu0 0.0
    %2165 = vmatprep.subr.mxu0 0.0
    %2166 = vmatpush2.msra.mxu0 0.0
    %2167 = vmatprep.subr.mxu0 0.0
    %2168 = vmatpush2.msra.mxu0 0.0
    %2169 = vmatprep.subr.mxu0 0.0
    %2170 = vmatpush2.msra.mxu0 0.0
    %2171 = vmatprep.mubr.f32.mxu0 0.0
    %2172 = vmatmul.mubr.f32.gmra.mxu0 %v2105
    %v2173 = vpop.f32.mrf.mxu0
    %v2174 = vadd.f32 0.0, %v2173
    %v2175 = vpop.f32.mrf.mxu0
    %2176 = vdwg.mxu0
    %v2178 = vsel %vm1042, %v1737, 0
    %2180 = vmatprep.subr.mxu0 0.0
    %2181 = vmatpush1.msra.mxu0 0.0
    %2182 = vmatprep.subr.mxu0 0.0
    %2183 = vmatpush1.msra.mxu0 0.0
    %2184 = vmatprep.subr.mxu0 0.0
    %2185 = vmatpush1.msra.mxu0 0.0
    %2186 = vmatprep.subr.mxu0 0.0
    %2187 = vmatpush1.msra.mxu0 0.0
    %2188 = vmatprep.subr.mxu0 0.0
    %2189 = vmatpush1.msra.mxu0 0.0
    %2190 = vmatprep.subr.mxu0 0.0
    %2191 = vmatpush1.msra.mxu0 0.0
    %2192 = vmatprep.subr.mxu0 0.0
    %2193 = vmatpush1.msra.mxu0 0.0
    %2194 = vmatprep.subr.mxu0 0.0
    %2195 = vmatpush1.msra.mxu0 0.0
    %2196 = vmatprep.subr.mxu0 0.0
    %2197 = vmatpush1.msra.mxu0 0.0
    %2198 = vmatprep.subr.mxu0 0.0
    %2199 = vmatpush1.msra.mxu0 0.0
    %2200 = vmatprep.subr.mxu0 0.0
    %2201 = vmatpush1.msra.mxu0 0.0
    %2202 = vmatprep.subr.mxu0 0.0
    %2203 = vmatpush1.msra.mxu0 0.0
    %2204 = vmatprep.subr.mxu0 0.0
    %2205 = vmatpush1.msra.mxu0 0.0
    %2206 = vmatprep.subr.mxu0 0.0
    %2207 = vmatpush1.msra.mxu0 0.0
    %2208 = vmatprep.subr.mxu0 0.0
    %2209 = vmatpush1.msra.mxu0 0.0
    %2210 = vmatprep.subr.mxu0 0.0
    %2211 = vmatpush1.msra.mxu0 %v1040
    %2212 = vmatprep.subr.mxu0 0.0
    %2213 = vmatpush2.msra.mxu0 0.0
    %2214 = vmatprep.subr.mxu0 0.0
    %2215 = vmatpush2.msra.mxu0 0.0
    %2216 = vmatprep.subr.mxu0 0.0
    %2217 = vmatpush2.msra.mxu0 0.0
    %2218 = vmatprep.subr.mxu0 0.0
    %2219 = vmatpush2.msra.mxu0 0.0
    %2220 = vmatprep.subr.mxu0 0.0
    %2221 = vmatpush2.msra.mxu0 0.0
    %2222 = vmatprep.subr.mxu0 0.0
    %2223 = vmatpush2.msra.mxu0 0.0
    %2224 = vmatprep.subr.mxu0 0.0
    %2225 = vmatpush2.msra.mxu0 0.0
    %2226 = vmatprep.subr.mxu0 0.0
    %2227 = vmatpush2.msra.mxu0 0.0
    %2228 = vmatprep.subr.mxu0 0.0
    %2229 = vmatpush2.msra.mxu0 0.0
    %2230 = vmatprep.subr.mxu0 0.0
    %2231 = vmatpush2.msra.mxu0 0.0
    %2232 = vmatprep.subr.mxu0 0.0
    %2233 = vmatpush2.msra.mxu0 0.0
    %2234 = vmatprep.subr.mxu0 0.0
    %2235 = vmatpush2.msra.mxu0 0.0
    %2236 = vmatprep.subr.mxu0 0.0
    %2237 = vmatpush2.msra.mxu0 0.0
    %2238 = vmatprep.subr.mxu0 0.0
    %2239 = vmatpush2.msra.mxu0 0.0
    %2240 = vmatprep.subr.mxu0 0.0
    %2241 = vmatpush2.msra.mxu0 0.0
    %2242 = vmatprep.subr.mxu0 0.0
    %2243 = vmatpush2.msra.mxu0 0.0
    %2244 = vmatprep.mubr.f32.mxu0 0.0
    %2245 = vmatmul.mubr.f32.gmra.mxu0 %v2178
    %v2246 = vpop.f32.mrf.mxu0
    %v2247 = vadd.f32 0.0, %v2246
    %v2248 = vpop.f32.mrf.mxu0
    %2249 = vdwg.mxu0
    %v2251 = vsel %vm1042, %v1738, 0
    %2253 = vmatprep.subr.mxu0 0.0
    %2254 = vmatpush1.msra.mxu0 0.0
    %2255 = vmatprep.subr.mxu0 0.0
    %2256 = vmatpush1.msra.mxu0 0.0
    %2257 = vmatprep.subr.mxu0 0.0
    %2258 = vmatpush1.msra.mxu0 0.0
    %2259 = vmatprep.subr.mxu0 0.0
    %2260 = vmatpush1.msra.mxu0 0.0
    %2261 = vmatprep.subr.mxu0 0.0
    %2262 = vmatpush1.msra.mxu0 0.0
    %2263 = vmatprep.subr.mxu0 0.0
    %2264 = vmatpush1.msra.mxu0 0.0
    %2265 = vmatprep.subr.mxu0 0.0
    %2266 = vmatpush1.msra.mxu0 0.0
    %2267 = vmatprep.subr.mxu0 0.0
    %2268 = vmatpush1.msra.mxu0 0.0
    %2269 = vmatprep.subr.mxu0 0.0
    %2270 = vmatpush1.msra.mxu0 0.0
    %2271 = vmatprep.subr.mxu0 0.0
    %2272 = vmatpush1.msra.mxu0 0.0
    %2273 = vmatprep.subr.mxu0 0.0
    %2274 = vmatpush1.msra.mxu0 0.0
    %2275 = vmatprep.subr.mxu0 0.0
    %2276 = vmatpush1.msra.mxu0 0.0
    %2277 = vmatprep.subr.mxu0 0.0
    %2278 = vmatpush1.msra.mxu0 0.0
    %2279 = vmatprep.subr.mxu0 0.0
    %2280 = vmatpush1.msra.mxu0 0.0
    %2281 = vmatprep.subr.mxu0 0.0
    %2282 = vmatpush1.msra.mxu0 0.0
    %2283 = vmatprep.subr.mxu0 0.0
    %2284 = vmatpush1.msra.mxu0 %v1041
    %2285 = vmatprep.subr.mxu0 0.0
    %2286 = vmatpush2.msra.mxu0 0.0
    %2287 = vmatprep.subr.mxu0 0.0
    %2288 = vmatpush2.msra.mxu0 0.0
    %2289 = vmatprep.subr.mxu0 0.0
    %2290 = vmatpush2.msra.mxu0 0.0
    %2291 = vmatprep.subr.mxu0 0.0
    %2292 = vmatpush2.msra.mxu0 0.0
    %2293 = vmatprep.subr.mxu0 0.0
    %2294 = vmatpush2.msra.mxu0 0.0
    %2295 = vmatprep.subr.mxu0 0.0
    %2296 = vmatpush2.msra.mxu0 0.0
    %2297 = vmatprep.subr.mxu0 0.0
    %2298 = vmatpush2.msra.mxu0 0.0
    %2299 = vmatprep.subr.mxu0 0.0
    %2300 = vmatpush2.msra.mxu0 0.0
    %2301 = vmatprep.subr.mxu0 0.0
    %2302 = vmatpush2.msra.mxu0 0.0
    %2303 = vmatprep.subr.mxu0 0.0
    %2304 = vmatpush2.msra.mxu0 0.0
    %2305 = vmatprep.subr.mxu0 0.0
    %2306 = vmatpush2.msra.mxu0 0.0
    %2307 = vmatprep.subr.mxu0 0.0
    %2308 = vmatpush2.msra.mxu0 0.0
    %2309 = vmatprep.subr.mxu0 0.0
    %2310 = vmatpush2.msra.mxu0 0.0
    %2311 = vmatprep.subr.mxu0 0.0
    %2312 = vmatpush2.msra.mxu0 0.0
    %2313 = vmatprep.subr.mxu0 0.0
    %2314 = vmatpush2.msra.mxu0 0.0
    %2315 = vmatprep.subr.mxu0 0.0
    %2316 = vmatpush2.msra.mxu0 0.0
    %2317 = vmatprep.mubr.f32.mxu0 0.0
    %2318 = vmatmul.mubr.f32.gmra.mxu0 %v2251
    %v2319 = vpop.f32.mrf.mxu0
    %v2320 = vadd.f32 0.0, %v2319
    %v2321 = vpop.f32.mrf.mxu0
    %2322 = vdwg.mxu0
    %v2323 = vcombine.low %v1809, %v1955
    %v2324 = vcombine.high %v1809, %v1955
    %v2326 = vunpack.c.l.s4 1983009808
    %v2327 = vunpack.c.0.s8 %v2326
    %v2328 = vlaneseq
    %v2329 = vshrl.u32 %v2328, 7
    %v2330 = vsub.s32 %v2327, %v2329
    %v2331 = vrot.slane %v2323, %v2330
    %v2333 = vunpack.c.l.s4 1983009808
    %v2334 = vunpack.c.0.s8 %v2333
    %v2335 = vlaneseq
    %v2336 = vshrl.u32 %v2335, 7
    %v2337 = vsub.s32 %v2334, %v2336
    %v2338 = vrot.slane %v2324, %v2337
    %v2339 = vcombine.low %v1882, %v2028
    %v2340 = vcombine.high %v1882, %v2028
    %v2342 = vunpack.c.l.s4 1983009808
    %v2343 = vunpack.c.0.s8 %v2342
    %v2344 = vlaneseq
    %v2345 = vshrl.u32 %v2344, 7
    %v2346 = vsub.s32 %v2343, %v2345
    %v2347 = vrot.slane %v2339, %v2346
    %v2349 = vunpack.c.l.s4 1983009808
    %v2350 = vunpack.c.0.s8 %v2349
    %v2351 = vlaneseq
    %v2352 = vshrl.u32 %v2351, 7
    %v2353 = vsub.s32 %v2350, %v2352
    %v2354 = vrot.slane %v2340, %v2353
    %v2355 = vcombine.low %v2331, %v2347
    %v2356 = vcombine.high %v2331, %v2347
    %v2358 = vunpack.c.l.s4 1934713408
    %v2359 = vunpack.c.0.s8 %v2358
    %v2360 = vlaneseq
    %v2361 = vshrl.u32 %v2360, 7
    %v2362 = vsub.s32 %v2359, %v2361
    %v2363 = vrot.slane %v2355, %v2362
    %v2365 = vunpack.c.l.s4 1934713408
    %v2366 = vunpack.c.0.s8 %v2365
    %v2367 = vlaneseq
    %v2368 = vshrl.u32 %v2367, 7
    %v2369 = vsub.s32 %v2366, %v2368
    %v2370 = vrot.slane %v2356, %v2369
    %v2371 = vcombine.low %v2338, %v2354
    %v2372 = vcombine.high %v2338, %v2354
    %v2374 = vunpack.c.l.s4 1934713408
    %v2375 = vunpack.c.0.s8 %v2374
    %v2376 = vlaneseq
    %v2377 = vshrl.u32 %v2376, 7
    %v2378 = vsub.s32 %v2375, %v2377
    %v2379 = vrot.slane %v2371, %v2378
    %v2381 = vunpack.c.l.s4 1934713408
    %v2382 = vunpack.c.0.s8 %v2381
    %v2383 = vlaneseq
    %v2384 = vshrl.u32 %v2383, 7
    %v2385 = vsub.s32 %v2382, %v2384
    %v2386 = vrot.slane %v2372, %v2385
    %v2387 = vcombine.high %v2363, 0.0
    %v2388 = vcombine.high %v2370, 0.0
    %v2389 = vcombine.high %v2379, 0.0
    %v2390 = vcombine.high %v2386, 0.0
    %v2391 = vcombine.low %v2101, %v2247
    %v2392 = vcombine.high %v2101, %v2247
    %v2394 = vunpack.c.l.s4 1983009808
    %v2395 = vunpack.c.0.s8 %v2394
    %v2396 = vlaneseq
    %v2397 = vshrl.u32 %v2396, 7
    %v2398 = vsub.s32 %v2395, %v2397
    %v2399 = vrot.slane %v2391, %v2398
    %v2401 = vunpack.c.l.s4 1983009808
    %v2402 = vunpack.c.0.s8 %v2401
    %v2403 = vlaneseq
    %v2404 = vshrl.u32 %v2403, 7
    %v2405 = vsub.s32 %v2402, %v2404
    %v2406 = vrot.slane %v2392, %v2405
    %v2407 = vcombine.low %v2174, %v2320
    %v2408 = vcombine.high %v2174, %v2320
    %v2410 = vunpack.c.l.s4 1983009808
    %v2411 = vunpack.c.0.s8 %v2410
    %v2412 = vlaneseq
    %v2413 = vshrl.u32 %v2412, 7
    %v2414 = vsub.s32 %v2411, %v2413
    %v2415 = vrot.slane %v2407, %v2414
    %v2417 = vunpack.c.l.s4 1983009808
    %v2418 = vunpack.c.0.s8 %v2417
    %v2419 = vlaneseq
    %v2420 = vshrl.u32 %v2419, 7
    %v2421 = vsub.s32 %v2418, %v2420
    %v2422 = vrot.slane %v2408, %v2421
    %v2423 = vcombine.low %v2399, %v2415
    %v2424 = vcombine.high %v2399, %v2415
    %v2426 = vunpack.c.l.s4 1934713408
    %v2427 = vunpack.c.0.s8 %v2426
    %v2428 = vlaneseq
    %v2429 = vshrl.u32 %v2428, 7
    %v2430 = vsub.s32 %v2427, %v2429
    %v2431 = vrot.slane %v2423, %v2430
    %v2433 = vunpack.c.l.s4 1934713408
    %v2434 = vunpack.c.0.s8 %v2433
    %v2435 = vlaneseq
    %v2436 = vshrl.u32 %v2435, 7
    %v2437 = vsub.s32 %v2434, %v2436
    %v2438 = vrot.slane %v2424, %v2437
    %v2439 = vcombine.low %v2406, %v2422
    %v2440 = vcombine.high %v2406, %v2422
    %v2442 = vunpack.c.l.s4 1934713408
    %v2443 = vunpack.c.0.s8 %v2442
    %v2444 = vlaneseq
    %v2445 = vshrl.u32 %v2444, 7
    %v2446 = vsub.s32 %v2443, %v2445
    %v2447 = vrot.slane %v2439, %v2446
    %v2449 = vunpack.c.l.s4 1934713408
    %v2450 = vunpack.c.0.s8 %v2449
    %v2451 = vlaneseq
    %v2452 = vshrl.u32 %v2451, 7
    %v2453 = vsub.s32 %v2450, %v2452
    %v2454 = vrot.slane %v2440, %v2453
    %v2455 = vcombine.high %v2431, 0.0
    %v2456 = vcombine.high %v2438, 0.0
    %v2457 = vcombine.high %v2447, 0.0
    %v2458 = vcombine.high %v2454, 0.0
    %v2459 = vcombine.low %v2363, %v2370
    %v2461 = vunpack.c.l.s4 1983009808
    %v2462 = vunpack.c.0.s8 %v2461
    %v2463 = vlaneseq
    %v2464 = vshrl.u32 %v2463, 7
    %v2465 = vsub.s32 %v2462, %v2464
    %v2466 = vrot.slane %v2459, %v2465
    %v2467 = vcombine.low %v2387, %v2388
    %v2469 = vunpack.c.l.s4 1983009808
    %v2470 = vunpack.c.0.s8 %v2469
    %v2471 = vlaneseq
    %v2472 = vshrl.u32 %v2471, 7
    %v2473 = vsub.s32 %v2470, %v2472
    %v2474 = vrot.slane %v2467, %v2473
    %v2475 = vcombine.low %v2379, %v2386
    %v2477 = vunpack.c.l.s4 1983009808
    %v2478 = vunpack.c.0.s8 %v2477
    %v2479 = vlaneseq
    %v2480 = vshrl.u32 %v2479, 7
    %v2481 = vsub.s32 %v2478, %v2480
    %v2482 = vrot.slane %v2475, %v2481
    %v2483 = vcombine.low %v2389, %v2390
    %v2485 = vunpack.c.l.s4 1983009808
    %v2486 = vunpack.c.0.s8 %v2485
    %v2487 = vlaneseq
    %v2488 = vshrl.u32 %v2487, 7
    %v2489 = vsub.s32 %v2486, %v2488
    %v2490 = vrot.slane %v2483, %v2489
    %v2491 = vcombine.low %v2466, %v2474
    %v2492 = vcombine.high %v2466, %v2474
    %v2494 = vunpack.c.l.s4 1934713408
    %v2495 = vunpack.c.0.s8 %v2494
    %v2496 = vlaneseq
    %v2497 = vshrl.u32 %v2496, 7
    %v2498 = vsub.s32 %v2495, %v2497
    %v2499 = vrot.slane %v2491, %v2498
    %v2501 = vunpack.c.l.s4 1934713408
    %v2502 = vunpack.c.0.s8 %v2501
    %v2503 = vlaneseq
    %v2504 = vshrl.u32 %v2503, 7
    %v2505 = vsub.s32 %v2502, %v2504
    %v2506 = vrot.slane %v2492, %v2505
    %v2507 = vcombine.low %v2482, %v2490
    %v2508 = vcombine.high %v2482, %v2490
    %v2510 = vunpack.c.l.s4 1934713408
    %v2511 = vunpack.c.0.s8 %v2510
    %v2512 = vlaneseq
    %v2513 = vshrl.u32 %v2512, 7
    %v2514 = vsub.s32 %v2511, %v2513
    %v2515 = vrot.slane %v2507, %v2514
    %v2517 = vunpack.c.l.s4 1934713408
    %v2518 = vunpack.c.0.s8 %v2517
    %v2519 = vlaneseq
    %v2520 = vshrl.u32 %v2519, 7
    %v2521 = vsub.s32 %v2518, %v2520
    %v2522 = vrot.slane %v2508, %v2521
    %v2523 = vcombine.low %v2499, %v2515
    %v2524 = vcombine.high %v2499, %v2515
    %v2525 = vcombine.low %v2506, %v2522
    %v2526 = vcombine.high %v2506, %v2522
    %v2527 = vcombine.low %v2431, %v2438
    %v2529 = vunpack.c.l.s4 1983009808
    %v2530 = vunpack.c.0.s8 %v2529
    %v2531 = vlaneseq
    %v2532 = vshrl.u32 %v2531, 7
    %v2533 = vsub.s32 %v2530, %v2532
    %v2534 = vrot.slane %v2527, %v2533
    %v2535 = vcombine.low %v2455, %v2456
    %v2537 = vunpack.c.l.s4 1983009808
    %v2538 = vunpack.c.0.s8 %v2537
    %v2539 = vlaneseq
    %v2540 = vshrl.u32 %v2539, 7
    %v2541 = vsub.s32 %v2538, %v2540
    %v2542 = vrot.slane %v2535, %v2541
    %v2543 = vcombine.low %v2447, %v2454
    %v2545 = vunpack.c.l.s4 1983009808
    %v2546 = vunpack.c.0.s8 %v2545
    %v2547 = vlaneseq
    %v2548 = vshrl.u32 %v2547, 7
    %v2549 = vsub.s32 %v2546, %v2548
    %v2550 = vrot.slane %v2543, %v2549
    %v2551 = vcombine.low %v2457, %v2458
    %v2553 = vunpack.c.l.s4 1983009808
    %v2554 = vunpack.c.0.s8 %v2553
    %v2555 = vlaneseq
    %v2556 = vshrl.u32 %v2555, 7
    %v2557 = vsub.s32 %v2554, %v2556
    %v2558 = vrot.slane %v2551, %v2557
    %v2559 = vcombine.low %v2534, %v2542
    %v2560 = vcombine.high %v2534, %v2542
    %v2562 = vunpack.c.l.s4 1934713408
    %v2563 = vunpack.c.0.s8 %v2562
    %v2564 = vlaneseq
    %v2565 = vshrl.u32 %v2564, 7
    %v2566 = vsub.s32 %v2563, %v2565
    %v2567 = vrot.slane %v2559, %v2566
    %v2569 = vunpack.c.l.s4 1934713408
    %v2570 = vunpack.c.0.s8 %v2569
    %v2571 = vlaneseq
    %v2572 = vshrl.u32 %v2571, 7
    %v2573 = vsub.s32 %v2570, %v2572
    %v2574 = vrot.slane %v2560, %v2573
    %v2575 = vcombine.low %v2550, %v2558
    %v2576 = vcombine.high %v2550, %v2558
    %v2578 = vunpack.c.l.s4 1934713408
    %v2579 = vunpack.c.0.s8 %v2578
    %v2580 = vlaneseq
    %v2581 = vshrl.u32 %v2580, 7
    %v2582 = vsub.s32 %v2579, %v2581
    %v2583 = vrot.slane %v2575, %v2582
    %v2585 = vunpack.c.l.s4 1934713408
    %v2586 = vunpack.c.0.s8 %v2585
    %v2587 = vlaneseq
    %v2588 = vshrl.u32 %v2587, 7
    %v2589 = vsub.s32 %v2586, %v2588
    %v2590 = vrot.slane %v2576, %v2589
    %v2591 = vcombine.low %v2567, %v2583
    %v2592 = vcombine.high %v2567, %v2583
    %v2593 = vcombine.low %v2574, %v2590
    %v2594 = vcombine.high %v2574, %v2590
    %2597 = vrot.lane.b32.xlu0 %v2524, 8
    %v2598 = vpop.permute.xlu0 %2597
    %2599 = vrot.lane.b32.xlu0 %v2592, 8
    %v2600 = vpop.permute.xlu0 %2599
    %2605 = vrot.lane.b32.xlu0 %v2525, 16
    %v2606 = vpop.permute.xlu0 %2605
    %2607 = vrot.lane.b32.xlu0 %v2593, 16
    %v2608 = vpop.permute.xlu0 %2607
    %2613 = vrot.lane.b32.xlu0 %v2526, 24
    %v2614 = vpop.permute.xlu0 %2613
    %2615 = vrot.lane.b32.xlu0 %v2594, 24
    %v2616 = vpop.permute.xlu0 %2615
    %v2619 = vsel %vm1042, %v2523, %v2598
    %v2620 = vsel %vm1042, %v2591, %v2600
    %vm2621 = vcmask 130048
    %v2622 = vsel %vm2621, %v2619, %v2606
    %v2623 = vsel %vm2621, %v2620, %v2608
    %vm2624 = vcmask 195584
    %v2625 = vsel %vm2624, %v2622, %v2614
    %v2626 = vsel %vm2624, %v2623, %v2616
    %v2627 = vld [vmem:[%s3] sm:$0xff]
    %v2628 = vld [vmem:[%s3 + $0x8] sm:$0xff]
    %v2629 = vld [vmem:[%s3 + $0x10] sm:$0xff]
    %v2630 = vld [vmem:[%s3 + $0x18] sm:$0xff]
    %v2631 = vlaneseq
    %v2632 = vshrl.u32 %v2631, 7
    %v2633 = vsub.s32 0, %v2632
    %v2634 = vrot.slane %v28, %v2633
    %v2636 = vsel %vm33, %v2625, 0
    %v2639 = vsel %vm33, %v2626, 0
    %2641 = vmatprep.subr.mxu0 0.0
    %2642 = vmatpush1.msra.mxu0 0.0
    %2643 = vmatprep.subr.mxu0 0.0
    %2644 = vmatpush1.msra.mxu0 0.0
    %2645 = vmatprep.subr.mxu0 0.0
    %2646 = vmatpush1.msra.mxu0 0.0
    %2647 = vmatprep.subr.mxu0 0.0
    %2648 = vmatpush1.msra.mxu0 0.0
    %2649 = vmatprep.subr.mxu0 0.0
    %2650 = vmatpush1.msra.mxu0 0.0
    %2651 = vmatprep.subr.mxu0 0.0
    %2652 = vmatpush1.msra.mxu0 0.0
    %2653 = vmatprep.subr.mxu0 0.0
    %2654 = vmatpush1.msra.mxu0 0.0
    %2655 = vmatprep.subr.mxu0 0.0
    %2656 = vmatpush1.msra.mxu0 0.0
    %2657 = vmatprep.subr.mxu0 0.0
    %2658 = vmatpush1.msra.mxu0 0.0
    %2659 = vmatprep.subr.mxu0 0.0
    %2660 = vmatpush1.msra.mxu0 0.0
    %2661 = vmatprep.subr.mxu0 0.0
    %2662 = vmatpush1.msra.mxu0 0.0
    %2663 = vmatprep.subr.mxu0 0.0
    %2664 = vmatpush1.msra.mxu0 0.0
    %2665 = vmatprep.subr.mxu0 0.0
    %2666 = vmatpush1.msra.mxu0 %v2630
    %2667 = vmatprep.subr.mxu0 0.0
    %2668 = vmatpush1.msra.mxu0 %v2629
    %2669 = vmatprep.subr.mxu0 0.0
    %2670 = vmatpush1.msra.mxu0 %v2628
    %2671 = vmatprep.subr.mxu0 0.0
    %2672 = vmatpush1.msra.mxu0 %v2627
    %2673 = vmatprep.subr.mxu0 0.0
    %2674 = vmatpush2.msra.mxu0 0.0
    %2675 = vmatprep.subr.mxu0 0.0
    %2676 = vmatpush2.msra.mxu0 0.0
    %2677 = vmatprep.subr.mxu0 0.0
    %2678 = vmatpush2.msra.mxu0 0.0
    %2679 = vmatprep.subr.mxu0 0.0
    %2680 = vmatpush2.msra.mxu0 0.0
    %2681 = vmatprep.subr.mxu0 0.0
    %2682 = vmatpush2.msra.mxu0 0.0
    %2683 = vmatprep.subr.mxu0 0.0
    %2684 = vmatpush2.msra.mxu0 0.0
    %2685 = vmatprep.subr.mxu0 0.0
    %2686 = vmatpush2.msra.mxu0 0.0
    %2687 = vmatprep.subr.mxu0 0.0
    %2688 = vmatpush2.msra.mxu0 0.0
    %2689 = vmatprep.subr.mxu0 0.0
    %2690 = vmatpush2.msra.mxu0 0.0
    %2691 = vmatprep.subr.mxu0 0.0
    %2692 = vmatpush2.msra.mxu0 0.0
    %2693 = vmatprep.subr.mxu0 0.0
    %2694 = vmatpush2.msra.mxu0 0.0
    %2695 = vmatprep.subr.mxu0 0.0
    %2696 = vmatpush2.msra.mxu0 0.0
    %2697 = vmatprep.subr.mxu0 0.0
    %2698 = vmatpush2.msra.mxu0 0.0
    %2699 = vmatprep.subr.mxu0 0.0
    %2700 = vmatpush2.msra.mxu0 0.0
    %2701 = vmatprep.subr.mxu0 0.0
    %2702 = vmatpush2.msra.mxu0 0.0
    %2703 = vmatprep.subr.mxu0 0.0
    %2704 = vmatpush2.msra.mxu0 0.0
    %2705 = vmatprep.mubr.f32.mxu0 0.0
    %2706 = vmatmul.mubr.f32.gmra.mxu0 %v2636
    %v2707 = vpop.f32.mrf.mxu0
    %v2708 = vadd.f32 %v2634, %v2707
    %v2709 = vpop.f32.mrf.mxu0
    %2710 = vmatprep.mubr.f32.mxu0 0.0
    %2711 = vmatmul.mubr.f32.gmra.mxu0 %v2639
    %v2712 = vpop.f32.mrf.mxu0
    %v2713 = vadd.f32 %v2634, %v2712
    %v2714 = vpop.f32.mrf.mxu0
    %2715 = vdwg.mxu0
    %v2716 = vadd.f32 %v24, %v2708
    %v2717 = vadd.f32 %v25, %v2713
    %v2718 = vsel %vm33, %v2716, 0.0
    %2719 = vadd.xlane.f32.xlu0 %v2718
    %v2720 = vpop.xlane.xlu0 %2719
    %v2721 = vsel %vm33, %v2717, 0.0
    %2722 = vadd.xlane.f32.xlu0 %v2721
    %v2723 = vpop.xlane.xlu0 %2722
    %v2724 = vmul.f32 %v2720, %v40
    %v2725 = vmul.f32 %v2723, %v40
    %v2726 = vsub.f32 %v2716, %v2724
    %v2727 = vsub.f32 %v2717, %v2725
    %v2728 = vmul.f32 %v2726, %v2726
    %v2729 = vmul.f32 %v2727, %v2727
    %v2730 = vsel %vm33, %v2728, 0.0
    %2731 = vadd.xlane.f32.xlu0 %v2730
    %v2732 = vpop.xlane.xlu0 %2731
    %v2733 = vsel %vm33, %v2729, 0.0
    %2734 = vadd.xlane.f32.xlu0 %v2733
    %v2735 = vpop.xlane.xlu0 %2734
    %v2736 = vmul.f32 %v2732, %v40
    %v2737 = vmul.f32 %v2735, %v40
    %v2738 = vadd.f32 %v2736, 1e-05
    %v2739 = vadd.f32 %v2737, 1e-05
    %v2740 = vrsqrt.pop %v2738
    %v2741 = vrsqrt.pop %v2739
    %v2742 = vmul.f32 %v2726, %v2740
    %v2743 = vmul.f32 %v2727, %v2741
    %v2744 = vlaneseq
    %v2745 = vshrl.u32 %v2744, 7
    %v2746 = vsub.s32 0, %v2745
    %v2747 = vrot.slane %v29, %v2746
    %v2748 = vmul.f32 %v2742, %v2747
    %v2749 = vmul.f32 %v2743, %v2747
    %v2750 = vlaneseq
    %v2751 = vshrl.u32 %v2750, 7
    %v2752 = vsub.s32 0, %v2751
    %v2753 = vrot.slane %v30, %v2752
    %v2754 = vadd.f32 %v2748, %v2753
    %v2755 = vadd.f32 %v2749, %v2753
    %v2756 = vld [vmem:[%s4] sm:$0xff]
    %v2757 = vld [vmem:[%s4 + $0x8] sm:$0xff]
    %v2758 = vld [vmem:[%s4 + $0x10] sm:$0xff]
    %v2759 = vld [vmem:[%s4 + $0x18] sm:$0xff]
    %v2760 = vlaneseq
    %v2761 = vshrl.u32 %v2760, 7
    %v2762 = vsub.s32 0, %v2761
    %v2763 = vrot.slane %v32, %v2762
    %v2765 = vsel %vm33, %v2754, 0
    %v2768 = vsel %vm33, %v2755, 0
    %2770 = vmatprep.subr.mxu0 0.0
    %2771 = vmatpush1.msra.mxu0 0.0
    %2772 = vmatprep.subr.mxu0 0.0
    %2773 = vmatpush1.msra.mxu0 0.0
    %2774 = vmatprep.subr.mxu0 0.0
    %2775 = vmatpush1.msra.mxu0 0.0
    %2776 = vmatprep.subr.mxu0 0.0
    %2777 = vmatpush1.msra.mxu0 0.0
    %2778 = vmatprep.subr.mxu0 0.0
    %2779 = vmatpush1.msra.mxu0 0.0
    %2780 = vmatprep.subr.mxu0 0.0
    %2781 = vmatpush1.msra.mxu0 0.0
    %2782 = vmatprep.subr.mxu0 0.0
    %2783 = vmatpush1.msra.mxu0 0.0
    %2784 = vmatprep.subr.mxu0 0.0
    %2785 = vmatpush1.msra.mxu0 0.0
    %2786 = vmatprep.subr.mxu0 0.0
    %2787 = vmatpush1.msra.mxu0 0.0
    %2788 = vmatprep.subr.mxu0 0.0
    %2789 = vmatpush1.msra.mxu0 0.0
    %2790 = vmatprep.subr.mxu0 0.0
    %2791 = vmatpush1.msra.mxu0 0.0
    %2792 = vmatprep.subr.mxu0 0.0
    %2793 = vmatpush1.msra.mxu0 0.0
    %2794 = vmatprep.subr.mxu0 0.0
    %2795 = vmatpush1.msra.mxu0 %v2759
    %2796 = vmatprep.subr.mxu0 0.0
    %2797 = vmatpush1.msra.mxu0 %v2758
    %2798 = vmatprep.subr.mxu0 0.0
    %2799 = vmatpush1.msra.mxu0 %v2757
    %2800 = vmatprep.subr.mxu0 0.0
    %2801 = vmatpush1.msra.mxu0 %v2756
    %2802 = vmatprep.subr.mxu0 0.0
    %2803 = vmatpush2.msra.mxu0 0.0
    %2804 = vmatprep.subr.mxu0 0.0
    %2805 = vmatpush2.msra.mxu0 0.0
    %2806 = vmatprep.subr.mxu0 0.0
    %2807 = vmatpush2.msra.mxu0 0.0
    %2808 = vmatprep.subr.mxu0 0.0
    %2809 = vmatpush2.msra.mxu0 0.0
    %2810 = vmatprep.subr.mxu0 0.0
    %2811 = vmatpush2.msra.mxu0 0.0
    %2812 = vmatprep.subr.mxu0 0.0
    %2813 = vmatpush2.msra.mxu0 0.0
    %2814 = vmatprep.subr.mxu0 0.0
    %2815 = vmatpush2.msra.mxu0 0.0
    %2816 = vmatprep.subr.mxu0 0.0
    %2817 = vmatpush2.msra.mxu0 0.0
    %2818 = vmatprep.subr.mxu0 0.0
    %2819 = vmatpush2.msra.mxu0 0.0
    %2820 = vmatprep.subr.mxu0 0.0
    %2821 = vmatpush2.msra.mxu0 0.0
    %2822 = vmatprep.subr.mxu0 0.0
    %2823 = vmatpush2.msra.mxu0 0.0
    %2824 = vmatprep.subr.mxu0 0.0
    %2825 = vmatpush2.msra.mxu0 0.0
    %2826 = vmatprep.subr.mxu0 0.0
    %2827 = vmatpush2.msra.mxu0 0.0
    %2828 = vmatprep.subr.mxu0 0.0
    %2829 = vmatpush2.msra.mxu0 0.0
    %2830 = vmatprep.subr.mxu0 0.0
    %2831 = vmatpush2.msra.mxu0 0.0
    %2832 = vmatprep.subr.mxu0 0.0
    %2833 = vmatpush2.msra.mxu0 0.0
    %2834 = vmatprep.mubr.f32.mxu0 0.0
    %2835 = vmatmul.mubr.f32.gmra.mxu0 %v2765
    %v2836 = vpop.f32.mrf.mxu0
    %v2837 = vadd.f32 %v2763, %v2836
    %v2838 = vpop.f32.mrf.mxu0
    %2839 = vmatprep.mubr.f32.mxu0 0.0
    %2840 = vmatmul.mubr.f32.gmra.mxu0 %v2768
    %v2841 = vpop.f32.mrf.mxu0
    %v2842 = vadd.f32 %v2763, %v2841
    %v2843 = vpop.f32.mrf.mxu0
    %2844 = vdwg.mxu0
    %v2845 = vmax.f32 %v2837, 0.0
    %v2846 = vmax.f32 %v2842, 0.0
    %v2847 = vld [vmem:[%s5] sm:$0xff]
    %v2848 = vld [vmem:[%s5 + $0x8] sm:$0xff]
    %v2849 = vld [vmem:[%s5 + $0x10] sm:$0xff]
    %v2850 = vld [vmem:[%s5 + $0x18] sm:$0xff]
    %v2851 = vld [vmem:[%s5 + $0x20] sm:$0xff]
    %v2852 = vld [vmem:[%s5 + $0x28] sm:$0xff]
    %v2853 = vld [vmem:[%s5 + $0x30] sm:$0xff]
    %v2854 = vld [vmem:[%s5 + $0x38] sm:$0xff]
    %v2855 = vld [vmem:[%s5 + $0x40] sm:$0xff]
    %v2856 = vld [vmem:[%s5 + $0x48] sm:$0xff]
    %v2857 = vld [vmem:[%s5 + $0x50] sm:$0xff]
    %v2858 = vld [vmem:[%s5 + $0x58] sm:$0xff]
    %v2859 = vld [vmem:[%s5 + $0x60] sm:$0xff]
    %v2860 = vld [vmem:[%s5 + $0x68] sm:$0xff]
    %v2861 = vld [vmem:[%s5 + $0x70] sm:$0xff]
    %v2862 = vld [vmem:[%s5 + $0x78] sm:$0xff]
    %v2863 = vlaneseq
    %v2864 = vshrl.u32 %v2863, 7
    %v2865 = vsub.s32 0, %v2864
    %v2866 = vrot.slane %v31, %v2865
    %2867 = vmatprep.subr.mxu0 0.0
    %2868 = vmatpush1.msra.mxu0 %v2862
    %2869 = vmatprep.subr.mxu0 0.0
    %2870 = vmatpush1.msra.mxu0 %v2861
    %2871 = vmatprep.subr.mxu0 0.0
    %2872 = vmatpush1.msra.mxu0 %v2860
    %2873 = vmatprep.subr.mxu0 0.0
    %2874 = vmatpush1.msra.mxu0 %v2859
    %2875 = vmatprep.subr.mxu0 0.0
    %2876 = vmatpush1.msra.mxu0 %v2858
    %2877 = vmatprep.subr.mxu0 0.0
    %2878 = vmatpush1.msra.mxu0 %v2857
    %2879 = vmatprep.subr.mxu0 0.0
    %2880 = vmatpush1.msra.mxu0 %v2856
    %2881 = vmatprep.subr.mxu0 0.0
    %2882 = vmatpush1.msra.mxu0 %v2855
    %2883 = vmatprep.subr.mxu0 0.0
    %2884 = vmatpush1.msra.mxu0 %v2854
    %2885 = vmatprep.subr.mxu0 0.0
    %2886 = vmatpush1.msra.mxu0 %v2853
    %2887 = vmatprep.subr.mxu0 0.0
    %2888 = vmatpush1.msra.mxu0 %v2852
    %2889 = vmatprep.subr.mxu0 0.0
    %2890 = vmatpush1.msra.mxu0 %v2851
    %2891 = vmatprep.subr.mxu0 0.0
    %2892 = vmatpush1.msra.mxu0 %v2850
    %2893 = vmatprep.subr.mxu0 0.0
    %2894 = vmatpush1.msra.mxu0 %v2849
    %2895 = vmatprep.subr.mxu0 0.0
    %2896 = vmatpush1.msra.mxu0 %v2848
    %2897 = vmatprep.subr.mxu0 0.0
    %2898 = vmatpush1.msra.mxu0 %v2847
    %2899 = vmatprep.subr.mxu0 0.0
    %2900 = vmatpush2.msra.mxu0 0.0
    %2901 = vmatprep.subr.mxu0 0.0
    %2902 = vmatpush2.msra.mxu0 0.0
    %2903 = vmatprep.subr.mxu0 0.0
    %2904 = vmatpush2.msra.mxu0 0.0
    %2905 = vmatprep.subr.mxu0 0.0
    %2906 = vmatpush2.msra.mxu0 0.0
    %2907 = vmatprep.subr.mxu0 0.0
    %2908 = vmatpush2.msra.mxu0 0.0
    %2909 = vmatprep.subr.mxu0 0.0
    %2910 = vmatpush2.msra.mxu0 0.0
    %2911 = vmatprep.subr.mxu0 0.0
    %2912 = vmatpush2.msra.mxu0 0.0
    %2913 = vmatprep.subr.mxu0 0.0
    %2914 = vmatpush2.msra.mxu0 0.0
    %2915 = vmatprep.subr.mxu0 0.0
    %2916 = vmatpush2.msra.mxu0 0.0
    %2917 = vmatprep.subr.mxu0 0.0
    %2918 = vmatpush2.msra.mxu0 0.0
    %2919 = vmatprep.subr.mxu0 0.0
    %2920 = vmatpush2.msra.mxu0 0.0
    %2921 = vmatprep.subr.mxu0 0.0
    %2922 = vmatpush2.msra.mxu0 0.0
    %2923 = vmatprep.subr.mxu0 0.0
    %2924 = vmatpush2.msra.mxu0 0.0
    %2925 = vmatprep.subr.mxu0 0.0
    %2926 = vmatpush2.msra.mxu0 0.0
    %2927 = vmatprep.subr.mxu0 0.0
    %2928 = vmatpush2.msra.mxu0 0.0
    %2929 = vmatprep.subr.mxu0 0.0
    %2930 = vmatpush2.msra.mxu0 0.0
    %2931 = vmatprep.mubr.f32.mxu0 0.0
    %2932 = vmatmul.mubr.f32.gmra.mxu0 %v2845
    %v2933 = vpop.f32.mrf.mxu0
    %v2934 = vadd.f32 %v2866, %v2933
    %v2935 = vpop.f32.mrf.mxu0
    %2936 = vmatprep.mubr.f32.mxu0 0.0
    %2937 = vmatmul.mubr.f32.gmra.mxu0 %v2846
    %v2938 = vpop.f32.mrf.mxu0
    %v2939 = vadd.f32 %v2866, %v2938
    %v2940 = vpop.f32.mrf.mxu0
    %2941 = vdwg.mxu0
    %v2942 = vadd.f32 %v2716, %v2934
    %v2943 = vadd.f32 %v2717, %v2939
    %2944 = vst.msk [vmem:[#allocation2] sm:$0xff] %vm33, %v2942
    %2945 = vst.msk [vmem:[#allocation2 + $0x8] sm:$0xff] %vm33, %v2943
    // Predicated region
    $region26: #{tpu_custom_call.1} parent=1 // pred_check
      _
    $region27: #{tpu_custom_call.1} parent=1 // pred_check_branch
      %2947 = sbr.rel (0) target = $region29
    $region28: #{tpu_custom_call.1} parent=1 // pred_region
      %s2949 = ssub.s32 256, 256
      %2950 = vsyncadd [#allocation3], %s2949
      %s2951 = sshll.u32 [#allocation2], 4
      %s2952 = int_to_ptr.vmem [resolvable:$true] %s2951
      %2957 = dma.vmem_to_hbm [thread:$0]  %s2952, 256, %s6, [#allocation3], 128, 128, 8
    $region29: #{tpu_custom_call.1} parent=1 // pred_fallthru
      _
    // Predicated region
    $region30: #{tpu_custom_call.1} parent=1 // pred_check
      _
    $region31: #{tpu_custom_call.1} parent=1 // pred_check_branch
      %2959 = sbr.rel (0) target = $region33
    $region32: #{tpu_custom_call.1} parent=1 // pred_region
      %2960 = dma.done [#allocation3], 256
    $region33: #{tpu_custom_call.1} parent=1 // pred_fallthru
      _
    %2961 = vsyncpa [#allocation3], 1

</llo_original>
